<compile_context>
chip_gen: v7x
topology: tpu7x:2x2x1
jax: 0.10.0
libtpu: 0.0.40
codegen_flags: <defaults>
</compile_context>

<pallas_src>
import jax
import jax.numpy as jnp
from jax.experimental import pallas as pl
from jax.experimental.pallas import tpu as pltpu

D = 128          # input / hidden size
T = 4            # sequence length created by x.expand(-1, 4, 128)
NCLS = 10        # real output classes
NPAD = 128       # classes padded to a full 128-lane vreg
NEG = -1e30      # pad-class bias: exp(NEG - max) == 0 exactly in f32


def _sigmoid(x):
    # sigmoid(x) == 0.5 * tanh(0.5 * x) + 0.5  -> one EUP push instead of exp+recip
    return 0.5 * jnp.tanh(0.5 * x) + 0.5


def _cell_update(gates, c):
    """PyTorch LSTM cell update; gate order i, f, g, o. gates: (B, 4*D) f32."""
    i = _sigmoid(gates[:, 0 * D:1 * D])
    f = _sigmoid(gates[:, 1 * D:2 * D])
    g = jnp.tanh(gates[:, 2 * D:3 * D])
    o = _sigmoid(gates[:, 3 * D:4 * D])
    c_new = f * c + i * g
    h_new = o * jnp.tanh(c_new)
    return h_new, c_new


def decoder_kernel(x_ref, wih0_ref, whh0_ref, w1_ref, b0_ref, b1_ref,
                   wcls_ref, bcls_ref, out_ref, hin_sc):
    TB = x_ref.shape[0]

    x = x_ref[...]                               # (TB,128) bf16 -- same vector every step
    wih0 = wih0_ref[...]                         # (128,512) bf16
    whh0 = whh0_ref[...]                         # (128,512) bf16
    w1 = w1_ref[...]                             # (256,512) bf16  [W_ih_l1 ; W_hh_l1]^T
    wcls = wcls_ref[...]                         # (128,128) bf16  classifier, cols 10..127 zero
    b0 = b0_ref[...]                             # (1,512) f32
    bcls = bcls_ref[...]                         # (1,128) f32, lanes 10..127 = -1e30

    # Hoist the loop-invariant input projection and the layer-1 bias broadcast.
    xw0 = jnp.dot(x, wih0, preferred_element_type=jnp.float32) + b0        # (TB,512)
    b1 = jnp.broadcast_to(b1_ref[...], (TB, 4 * D))                        # (TB,512)

    # Persistent bf16 scratch holding the fused layer-1 input [h0 | h1_prev].
    hin_sc[...] = jnp.zeros_like(hin_sc)
    c0 = jnp.zeros((TB, D), jnp.float32)
    c1 = jnp.zeros((TB, D), jnp.float32)

    for t in range(T):                           # T = 4, static unroll
        # layer 0: only the recurrent matmul is inside the loop (skipped at t=0, h0=0)
        if t == 0:
            g0 = xw0
        else:
            g0 = xw0 + jnp.dot(hin_sc[:, 0:D], whh0,
                               preferred_element_type=jnp.float32)
        h0, c0 = _cell_update(g0, c0)
        hin_sc[:, 0:D] = h0.astype(jnp.bfloat16)

        # layer 1: fused input + recurrent matmul (K = 256) from the bf16 scratch
        g1 = jnp.dot(hin_sc[...], w1, preferred_element_type=jnp.float32) + b1
        h1, c1 = _cell_update(g1, c1)
        h1b = h1.astype(jnp.bfloat16)
        hin_sc[:, D:2 * D] = h1b                 # h1_prev for the next step

        # classifier + softmax for this step: dense (TB,128)@(128,128) matmul,
        # full-128-lane softmax (pad classes contribute exactly 0), and a
        # 128-lane-aligned contiguous store.
        lg = jnp.dot(h1b, wcls, preferred_element_type=jnp.float32) + bcls  # (TB,128)
        m = jnp.max(lg, axis=-1, keepdims=True)
        e = jnp.exp(lg - m)
        s = jnp.sum(e, axis=-1, keepdims=True)
        out_ref[:, t * NPAD:(t + 1) * NPAD] = e * pl.reciprocal(s, approx=False)


def init_params(key):
    """PyTorch-style init U(-1/sqrt(H), 1/sqrt(H)); weights pre-transposed / pre-fused."""
    bound = 1.0 / jnp.sqrt(jnp.float32(D))
    ks = jax.random.split(key, 10)

    def u(k, shape):
        return jax.random.uniform(k, shape, jnp.float32, -bound, bound)

    w_ih0 = u(ks[0], (4 * D, D)); w_hh0 = u(ks[1], (4 * D, D))
    b_ih0 = u(ks[2], (4 * D,));   b_hh0 = u(ks[3], (4 * D,))
    w_ih1 = u(ks[4], (4 * D, D)); w_hh1 = u(ks[5], (4 * D, D))
    b_ih1 = u(ks[6], (4 * D,));   b_hh1 = u(ks[7], (4 * D,))
    w_out = u(ks[8], (NCLS, D));  b_out = u(ks[9], (NCLS,))

    wout_t = w_out.T                                                   # (128, 10)
    wcls = jnp.zeros((D, NPAD), jnp.float32).at[:, :NCLS].set(wout_t)  # (128,128)
    bcls = jnp.full((1, NPAD), NEG, jnp.float32).at[0, :NCLS].set(b_out)

    bf = lambda a: a.astype(jnp.bfloat16)
    return dict(
        wih0_t=bf(w_ih0.T), whh0_t=bf(w_hh0.T),
        b0=(b_ih0 + b_hh0)[None, :],
        w1_t=bf(jnp.concatenate([w_ih1.T, w_hh1.T], axis=0)),          # (256, 512)
        b1=(b_ih1 + b_hh1)[None, :],
        wcls=bf(wcls), bcls=bcls,
        # bf16 copies used by the pure-JAX reference (identical matmul operands)
        wout_t=bf(wout_t), bout=b_out[None, :],
    )


def _round_up(x, m):
    return (x + m - 1) // m * m


def _cdiv(a, b):
    return (a + b - 1) // b


def decoder_forward(x, params, *, max_block_b=512):
    # mirrors torch: x.reshape(-1,1,128).expand(-1,4,128) -> LSTM(2) -> Linear -> softmax
    x2 = x.reshape(-1, D).astype(jnp.bfloat16)
    B = x2.shape[0]

    ALIGN = 16                                   # bf16 sublane packing
    B_al = _round_up(B, ALIGN)
    n_tiles = _cdiv(B_al, max_block_b)
    if n_tiles == 1 and B_al >= 2 * ALIGN:
        n_tiles = 2                              # keep both v7x TensorCores busy
    TB = _round_up(_cdiv(B_al, n_tiles), ALIGN)  # bounded padding; TB <= max_block_b
    B_pad = n_tiles * TB
    if B_pad != B:
        x2 = jnp.pad(x2, ((0, B_pad - B), (0, 0)))

    const = lambda i: (0, 0)                     # weights resident across grid steps
    out = pl.pallas_call(
        decoder_kernel,
        out_shape=jax.ShapeDtypeStruct((B_pad, T * NPAD), jnp.float32),
        grid=(n_tiles,),
        in_specs=[
            pl.BlockSpec((TB, D), lambda i: (i, 0)),          # x (bf16), pipelined over batch
            pl.BlockSpec((D, 4 * D), const),                  # W_ih_l0^T
            pl.BlockSpec((D, 4 * D), const),                  # W_hh_l0^T
            pl.BlockSpec((2 * D, 4 * D), const),              # [W_ih_l1 ; W_hh_l1]^T
            pl.BlockSpec((1, 4 * D), const),                  # b_ih_l0 + b_hh_l0
            pl.BlockSpec((1, 4 * D), const),                  # b_ih_l1 + b_hh_l1
            pl.BlockSpec((D, NPAD), const),                   # padded classifier W (128,128)
            pl.BlockSpec((1, NPAD), const),                   # padded classifier bias
        ],
        out_specs=pl.BlockSpec((TB, T * NPAD), lambda i: (i, 0)),
        scratch_shapes=[pltpu.VMEM((TB, 2 * D), jnp.bfloat16)],   # fused [h0 | h1] input
        compiler_params=pltpu.CompilerParams(
            dimension_semantics=("parallel",),
            vmem_limit_bytes=40 * 1024 * 1024),
    )(x2, params["wih0_t"], params["whh0_t"], params["w1_t"],
      params["b0"], params["b1"], params["wcls"], params["bcls"])

    # lane-dense (B_pad, 4*128) kernel output -> (B, 4, 10)
    return out[:B].reshape(B, T, NPAD)[:, :, :NCLS]


def decoder_reference(x, params):
    """Pure-JAX reference with the same bf16-operand / f32-accumulate math."""
    x2 = x.reshape(-1, D).astype(jnp.bfloat16)
    B = x2.shape[0]
    xw0 = jnp.dot(x2, params["wih0_t"],
                  preferred_element_type=jnp.float32) + params["b0"]
    h0 = c0 = h1 = c1 = jnp.zeros((B, D), jnp.float32)
    outs = []
    for _ in range(T):
        g0 = xw0 + jnp.dot(h0.astype(jnp.bfloat16), params["whh0_t"],
                           preferred_element_type=jnp.float32)
        h0, c0 = _cell_update(g0, c0)
        hin = jnp.concatenate([h0, h1], axis=-1).astype(jnp.bfloat16)
        g1 = jnp.dot(hin, params["w1_t"], preferred_element_type=jnp.float32) + params["b1"]
        h1, c1 = _cell_update(g1, c1)
        logits = jnp.dot(h1.astype(jnp.bfloat16), params["wout_t"],
                         preferred_element_type=jnp.float32) + params["bout"]
        outs.append(jax.nn.softmax(logits, axis=-1))
    return jnp.stack(outs, axis=1)               # (B, 4, 10)


if __name__ == "__main__":
    key = jax.random.PRNGKey(0)
    k_param, k_x = jax.random.split(key)

    params = init_params(k_param)
    x = jax.random.normal(k_x, (8, D), jnp.float32)   # batch=8 encoder embeddings (B,128)

    out = jax.block_until_ready(decoder_forward(x, params))
    ref = decoder_reference(x, params)

    assert out.shape == (8, T, NCLS)
    # bf16 matmul operands => mildly relaxed tolerance vs the pure-JAX reference
    assert jnp.allclose(out, ref, atol=3e-3, rtol=3e-3), "mismatch vs reference"
    # exact-reciprocal softmax: rows sum to 1 within f32 rounding
    assert jnp.allclose(jnp.sum(out, axis=-1), 1.0, atol=1e-3)

    print("KERNEL_OK")
</pallas_src>

<mosaic_0001>
module attributes {stable_mosaic.version = 11 : i64} {
  func.func @decoder_kernel(%arg0: i32, %arg1: memref<16x128xbf16, #tpu.memory_space<vmem>>, %arg2: memref<128x512xbf16, #tpu.memory_space<vmem>>, %arg3: memref<128x512xbf16, #tpu.memory_space<vmem>>, %arg4: memref<256x512xbf16, #tpu.memory_space<vmem>>, %arg5: memref<1x512xf32, #tpu.memory_space<vmem>>, %arg6: memref<1x512xf32, #tpu.memory_space<vmem>>, %arg7: memref<128x128xbf16, #tpu.memory_space<vmem>>, %arg8: memref<1x128xf32, #tpu.memory_space<vmem>>, %arg9: memref<16x512xf32, #tpu.memory_space<vmem>>, %arg10: memref<16x256xbf16, #tpu.memory_space<vmem>>) attributes {dimension_semantics = [#tpu.dimension_semantics<parallel>], iteration_bounds = array<i64: 1>, scalar_prefetch = 0 : i64, scratch_operands = 1 : i64, tpu.core_type = #tpu.core_type<tc>, window_params = [{transform_indices = @transform_0, window_bounds = array<i64: 16, 128>}, {pipeline_mode = #tpu.pipeline_mode<synchronous>, transform_indices = @transform_1, window_bounds = array<i64: 128, 512>}, {pipeline_mode = #tpu.pipeline_mode<synchronous>, transform_indices = @transform_2, window_bounds = array<i64: 128, 512>}, {pipeline_mode = #tpu.pipeline_mode<synchronous>, transform_indices = @transform_3, window_bounds = array<i64: 256, 512>}, {pipeline_mode = #tpu.pipeline_mode<synchronous>, transform_indices = @transform_4, window_bounds = array<i64: 1, 512>}, {pipeline_mode = #tpu.pipeline_mode<synchronous>, transform_indices = @transform_5, window_bounds = array<i64: 1, 512>}, {pipeline_mode = #tpu.pipeline_mode<synchronous>, transform_indices = @transform_6, window_bounds = array<i64: 128, 128>}, {pipeline_mode = #tpu.pipeline_mode<synchronous>, transform_indices = @transform_7, window_bounds = array<i64: 1, 128>}, {transform_indices = @transform_8, window_bounds = array<i64: 16, 512>}]} {
    %c0 = arith.constant 0 : index
    %c0_0 = arith.constant 0 : index
    %0 = vector.load %arg1[%c0, %c0_0] : memref<16x128xbf16, #tpu.memory_space<vmem>>, vector<16x128xbf16>
    %c0_1 = arith.constant 0 : index
    %c0_2 = arith.constant 0 : index
    %1 = vector.load %arg2[%c0_1, %c0_2] : memref<128x512xbf16, #tpu.memory_space<vmem>>, vector<128x512xbf16>
    %c0_3 = arith.constant 0 : index
    %c0_4 = arith.constant 0 : index
    %2 = vector.load %arg3[%c0_3, %c0_4] : memref<128x512xbf16, #tpu.memory_space<vmem>>, vector<128x512xbf16>
    %c0_5 = arith.constant 0 : index
    %c0_6 = arith.constant 0 : index
    %3 = vector.load %arg4[%c0_5, %c0_6] : memref<256x512xbf16, #tpu.memory_space<vmem>>, vector<256x512xbf16>
    %c0_7 = arith.constant 0 : index
    %c0_8 = arith.constant 0 : index
    %4 = vector.load %arg7[%c0_7, %c0_8] : memref<128x128xbf16, #tpu.memory_space<vmem>>, vector<128x128xbf16>
    %c0_9 = arith.constant 0 : index
    %c0_10 = arith.constant 0 : index
    %5 = vector.load %arg5[%c0_9, %c0_10] : memref<1x512xf32, #tpu.memory_space<vmem>>, vector<1x512xf32>
    %c0_11 = arith.constant 0 : index
    %c0_12 = arith.constant 0 : index
    %6 = vector.load %arg8[%c0_11, %c0_12] : memref<1x128xf32, #tpu.memory_space<vmem>>, vector<1x128xf32>
    %cst = arith.constant dense<0.000000e+00> : vector<16x512xf32>
    %7 = tpu.matmul %0, %1, %cst {dimension_numbers = #tpu.dot_dimension_numbers<[1], [0], [0], [1], [0, 0, 1, 1], [], []>} : vector<16x128xbf16>, vector<128x512xbf16>, vector<16x512xf32> -> vector<16x512xf32>
    %8 = vector.broadcast %5 : vector<1x512xf32> to vector<16x512xf32>
    %9 = arith.addf %7, %8 : vector<16x512xf32>
    %c0_13 = arith.constant 0 : index
    %c0_14 = arith.constant 0 : index
    %10 = vector.load %arg6[%c0_13, %c0_14] : memref<1x512xf32, #tpu.memory_space<vmem>>, vector<1x512xf32>
    %11 = vector.shape_cast %10 : vector<1x512xf32> to vector<1x512xf32>
    %12 = vector.broadcast %11 : vector<1x512xf32> to vector<16x512xf32>
    %cst_15 = arith.constant 0.000000e+00 : bf16
    %13 = vector.broadcast %cst_15 : bf16 to vector<16x256xbf16>
    %c0_16 = arith.constant 0 : index
    %c0_17 = arith.constant 0 : index
    %14 = vector.load %arg10[%c0_16, %c0_17] : memref<16x256xbf16, #tpu.memory_space<vmem>>, vector<16x256xbf16>
    tpu.vector_store %arg10[%c0_16, %c0_17], %13 {strides = array<i32>} : memref<16x256xbf16, #tpu.memory_space<vmem>>, vector<16x256xbf16>,
    %cst_18 = arith.constant 0.000000e+00 : f32
    %15 = vector.broadcast %cst_18 : f32 to vector<16x128xf32>
    %cst_19 = arith.constant 0.000000e+00 : f32
    %16 = vector.broadcast %cst_19 : f32 to vector<16x128xf32>
    %17 = vector.extract_strided_slice %9 {offsets = [0, 0], sizes = [16, 128], strides = [1, 1]} : vector<16x512xf32> to vector<16x128xf32>
    %cst_20 = arith.constant 5.000000e-01 : f32
    %18 = vector.broadcast %cst_20 : f32 to vector<16x128xf32>
    %19 = arith.mulf %18, %17 : vector<16x128xf32>
    %20 = math.tanh %19 : vector<16x128xf32>
    %cst_21 = arith.constant 5.000000e-01 : f32
    %21 = vector.broadcast %cst_21 : f32 to vector<16x128xf32>
    %22 = arith.mulf %21, %20 : vector<16x128xf32>
    %cst_22 = arith.constant 5.000000e-01 : f32
    %23 = vector.broadcast %cst_22 : f32 to vector<16x128xf32>
    %24 = arith.addf %22, %23 : vector<16x128xf32>
    %25 = vector.extract_strided_slice %9 {offsets = [0, 128], sizes = [16, 128], strides = [1, 1]} : vector<16x512xf32> to vector<16x128xf32>
    %cst_23 = arith.constant 5.000000e-01 : f32
    %26 = vector.broadcast %cst_23 : f32 to vector<16x128xf32>
    %27 = arith.mulf %26, %25 : vector<16x128xf32>
    %28 = math.tanh %27 : vector<16x128xf32>
    %cst_24 = arith.constant 5.000000e-01 : f32
    %29 = vector.broadcast %cst_24 : f32 to vector<16x128xf32>
    %30 = arith.mulf %29, %28 : vector<16x128xf32>
    %cst_25 = arith.constant 5.000000e-01 : f32
    %31 = vector.broadcast %cst_25 : f32 to vector<16x128xf32>
    %32 = arith.addf %30, %31 : vector<16x128xf32>
    %33 = vector.extract_strided_slice %9 {offsets = [0, 256], sizes = [16, 128], strides = [1, 1]} : vector<16x512xf32> to vector<16x128xf32>
    %34 = math.tanh %33 : vector<16x128xf32>
    %35 = vector.extract_strided_slice %9 {offsets = [0, 384], sizes = [16, 128], strides = [1, 1]} : vector<16x512xf32> to vector<16x128xf32>
    %cst_26 = arith.constant 5.000000e-01 : f32
    %36 = vector.broadcast %cst_26 : f32 to vector<16x128xf32>
    %37 = arith.mulf %36, %35 : vector<16x128xf32>
    %38 = math.tanh %37 : vector<16x128xf32>
    %cst_27 = arith.constant 5.000000e-01 : f32
    %39 = vector.broadcast %cst_27 : f32 to vector<16x128xf32>
    %40 = arith.mulf %39, %38 : vector<16x128xf32>
    %cst_28 = arith.constant 5.000000e-01 : f32
    %41 = vector.broadcast %cst_28 : f32 to vector<16x128xf32>
    %42 = arith.addf %40, %41 : vector<16x128xf32>
    %43 = arith.mulf %32, %15 : vector<16x128xf32>
    %44 = arith.mulf %24, %34 : vector<16x128xf32>
    %45 = arith.addf %43, %44 : vector<16x128xf32>
    %46 = math.tanh %45 : vector<16x128xf32>
    %47 = arith.mulf %42, %46 : vector<16x128xf32>
    %48 = arith.truncf %47 : vector<16x128xf32> to vector<16x128xbf16>
    %c0_29 = arith.constant 0 : index
    %c0_30 = arith.constant 0 : index
    %49 = vector.load %arg10[%c0_29, %c0_30] : memref<16x256xbf16, #tpu.memory_space<vmem>>, vector<16x128xbf16>
    tpu.vector_store %arg10[%c0_29, %c0_30], %48 {strides = array<i32>} : memref<16x256xbf16, #tpu.memory_space<vmem>>, vector<16x128xbf16>,
    %c0_31 = arith.constant 0 : index
    %c0_32 = arith.constant 0 : index
    %50 = vector.load %arg10[%c0_31, %c0_32] : memref<16x256xbf16, #tpu.memory_space<vmem>>, vector<16x256xbf16>
    %cst_33 = arith.constant dense<0.000000e+00> : vector<16x512xf32>
    %51 = tpu.matmul %50, %3, %cst_33 {dimension_numbers = #tpu.dot_dimension_numbers<[1], [0], [0], [1], [0, 0, 1, 1], [], []>} : vector<16x256xbf16>, vector<256x512xbf16>, vector<16x512xf32> -> vector<16x512xf32>
    %52 = arith.addf %51, %12 : vector<16x512xf32>
    %53 = vector.extract_strided_slice %52 {offsets = [0, 0], sizes = [16, 128], strides = [1, 1]} : vector<16x512xf32> to vector<16x128xf32>
    %cst_34 = arith.constant 5.000000e-01 : f32
    %54 = vector.broadcast %cst_34 : f32 to vector<16x128xf32>
    %55 = arith.mulf %54, %53 : vector<16x128xf32>
    %56 = math.tanh %55 : vector<16x128xf32>
    %cst_35 = arith.constant 5.000000e-01 : f32
    %57 = vector.broadcast %cst_35 : f32 to vector<16x128xf32>
    %58 = arith.mulf %57, %56 : vector<16x128xf32>
    %cst_36 = arith.constant 5.000000e-01 : f32
    %59 = vector.broadcast %cst_36 : f32 to vector<16x128xf32>
    %60 = arith.addf %58, %59 : vector<16x128xf32>
    %61 = vector.extract_strided_slice %52 {offsets = [0, 128], sizes = [16, 128], strides = [1, 1]} : vector<16x512xf32> to vector<16x128xf32>
    %cst_37 = arith.constant 5.000000e-01 : f32
    %62 = vector.broadcast %cst_37 : f32 to vector<16x128xf32>
    %63 = arith.mulf %62, %61 : vector<16x128xf32>
    %64 = math.tanh %63 : vector<16x128xf32>
    %cst_38 = arith.constant 5.000000e-01 : f32
    %65 = vector.broadcast %cst_38 : f32 to vector<16x128xf32>
    %66 = arith.mulf %65, %64 : vector<16x128xf32>
    %cst_39 = arith.constant 5.000000e-01 : f32
    %67 = vector.broadcast %cst_39 : f32 to vector<16x128xf32>
    %68 = arith.addf %66, %67 : vector<16x128xf32>
    %69 = vector.extract_strided_slice %52 {offsets = [0, 256], sizes = [16, 128], strides = [1, 1]} : vector<16x512xf32> to vector<16x128xf32>
    %70 = math.tanh %69 : vector<16x128xf32>
    %71 = vector.extract_strided_slice %52 {offsets = [0, 384], sizes = [16, 128], strides = [1, 1]} : vector<16x512xf32> to vector<16x128xf32>
    %cst_40 = arith.constant 5.000000e-01 : f32
    %72 = vector.broadcast %cst_40 : f32 to vector<16x128xf32>
    %73 = arith.mulf %72, %71 : vector<16x128xf32>
    %74 = math.tanh %73 : vector<16x128xf32>
    %cst_41 = arith.constant 5.000000e-01 : f32
    %75 = vector.broadcast %cst_41 : f32 to vector<16x128xf32>
    %76 = arith.mulf %75, %74 : vector<16x128xf32>
    %cst_42 = arith.constant 5.000000e-01 : f32
    %77 = vector.broadcast %cst_42 : f32 to vector<16x128xf32>
    %78 = arith.addf %76, %77 : vector<16x128xf32>
    %79 = arith.mulf %68, %16 : vector<16x128xf32>
    %80 = arith.mulf %60, %70 : vector<16x128xf32>
    %81 = arith.addf %79, %80 : vector<16x128xf32>
    %82 = math.tanh %81 : vector<16x128xf32>
    %83 = arith.mulf %78, %82 : vector<16x128xf32>
    %84 = arith.truncf %83 : vector<16x128xf32> to vector<16x128xbf16>
    %c0_43 = arith.constant 0 : index
    %c128 = arith.constant 128 : index
    %85 = vector.load %arg10[%c0_43, %c128] : memref<16x256xbf16, #tpu.memory_space<vmem>>, vector<16x128xbf16>
    tpu.vector_store %arg10[%c0_43, %c128], %84 {strides = array<i32>} : memref<16x256xbf16, #tpu.memory_space<vmem>>, vector<16x128xbf16>,
    %cst_44 = arith.constant dense<0.000000e+00> : vector<16x128xf32>
    %86 = tpu.matmul %84, %4, %cst_44 {dimension_numbers = #tpu.dot_dimension_numbers<[1], [0], [0], [1], [0, 0, 1, 1], [], []>} : vector<16x128xbf16>, vector<128x128xbf16>, vector<16x128xf32> -> vector<16x128xf32>
    %87 = vector.broadcast %6 : vector<1x128xf32> to vector<16x128xf32>
    %88 = arith.addf %86, %87 : vector<16x128xf32>
    %cst_45 = arith.constant dense<0xFF800000> : vector<16xf32>
    %89 = vector.multi_reduction <maximumf>, %88, %cst_45 [1] : vector<16x128xf32> to vector<16xf32>
    %90 = vector.shape_cast %89 : vector<16xf32> to vector<16x1xf32>
    %91 = vector.broadcast %90 : vector<16x1xf32> to vector<16x128xf32>
    %92 = arith.subf %88, %91 : vector<16x128xf32>
    %93 = math.exp %92 : vector<16x128xf32>
    %cst_46 = arith.constant dense<0.000000e+00> : vector<16xf32>
    %94 = vector.multi_reduction <add>, %93, %cst_46 [1] : vector<16x128xf32> to vector<16xf32>
    %95 = vector.shape_cast %94 : vector<16xf32> to vector<16x1xf32>
    %96 = tpu.reciprocal %95 : vector<16x1xf32> -> vector<16x1xf32>
    %97 = vector.broadcast %96 : vector<16x1xf32> to vector<16x128xf32>
    %98 = arith.mulf %93, %97 : vector<16x128xf32>
    %c0_47 = arith.constant 0 : index
    %c0_48 = arith.constant 0 : index
    %99 = vector.load %arg9[%c0_47, %c0_48] : memref<16x512xf32, #tpu.memory_space<vmem>>, vector<16x128xf32>
    tpu.vector_store %arg9[%c0_47, %c0_48], %98 {strides = array<i32>} : memref<16x512xf32, #tpu.memory_space<vmem>>, vector<16x128xf32>,
    %c0_49 = arith.constant 0 : index
    %c0_50 = arith.constant 0 : index
    %100 = vector.load %arg10[%c0_49, %c0_50] : memref<16x256xbf16, #tpu.memory_space<vmem>>, vector<16x128xbf16>
    %cst_51 = arith.constant dense<0.000000e+00> : vector<16x512xf32>
    %101 = tpu.matmul %100, %2, %cst_51 {dimension_numbers = #tpu.dot_dimension_numbers<[1], [0], [0], [1], [0, 0, 1, 1], [], []>} : vector<16x128xbf16>, vector<128x512xbf16>, vector<16x512xf32> -> vector<16x512xf32>
    %102 = arith.addf %9, %101 : vector<16x512xf32>
    %103 = vector.extract_strided_slice %102 {offsets = [0, 0], sizes = [16, 128], strides = [1, 1]} : vector<16x512xf32> to vector<16x128xf32>
    %cst_52 = arith.constant 5.000000e-01 : f32
    %104 = vector.broadcast %cst_52 : f32 to vector<16x128xf32>
    %105 = arith.mulf %104, %103 : vector<16x128xf32>
    %106 = math.tanh %105 : vector<16x128xf32>
    %cst_53 = arith.constant 5.000000e-01 : f32
    %107 = vector.broadcast %cst_53 : f32 to vector<16x128xf32>
    %108 = arith.mulf %107, %106 : vector<16x128xf32>
    %cst_54 = arith.constant 5.000000e-01 : f32
    %109 = vector.broadcast %cst_54 : f32 to vector<16x128xf32>
    %110 = arith.addf %108, %109 : vector<16x128xf32>
    %111 = vector.extract_strided_slice %102 {offsets = [0, 128], sizes = [16, 128], strides = [1, 1]} : vector<16x512xf32> to vector<16x128xf32>
    %cst_55 = arith.constant 5.000000e-01 : f32
    %112 = vector.broadcast %cst_55 : f32 to vector<16x128xf32>
    %113 = arith.mulf %112, %111 : vector<16x128xf32>
    %114 = math.tanh %113 : vector<16x128xf32>
    %cst_56 = arith.constant 5.000000e-01 : f32
    %115 = vector.broadcast %cst_56 : f32 to vector<16x128xf32>
    %116 = arith.mulf %115, %114 : vector<16x128xf32>
    %cst_57 = arith.constant 5.000000e-01 : f32
    %117 = vector.broadcast %cst_57 : f32 to vector<16x128xf32>
    %118 = arith.addf %116, %117 : vector<16x128xf32>
    %119 = vector.extract_strided_slice %102 {offsets = [0, 256], sizes = [16, 128], strides = [1, 1]} : vector<16x512xf32> to vector<16x128xf32>
    %120 = math.tanh %119 : vector<16x128xf32>
    %121 = vector.extract_strided_slice %102 {offsets = [0, 384], sizes = [16, 128], strides = [1, 1]} : vector<16x512xf32> to vector<16x128xf32>
    %cst_58 = arith.constant 5.000000e-01 : f32
    %122 = vector.broadcast %cst_58 : f32 to vector<16x128xf32>
    %123 = arith.mulf %122, %121 : vector<16x128xf32>
    %124 = math.tanh %123 : vector<16x128xf32>
    %cst_59 = arith.constant 5.000000e-01 : f32
    %125 = vector.broadcast %cst_59 : f32 to vector<16x128xf32>
    %126 = arith.mulf %125, %124 : vector<16x128xf32>
    %cst_60 = arith.constant 5.000000e-01 : f32
    %127 = vector.broadcast %cst_60 : f32 to vector<16x128xf32>
    %128 = arith.addf %126, %127 : vector<16x128xf32>
    %129 = arith.mulf %118, %45 : vector<16x128xf32>
    %130 = arith.mulf %110, %120 : vector<16x128xf32>
    %131 = arith.addf %129, %130 : vector<16x128xf32>
    %132 = math.tanh %131 : vector<16x128xf32>
    %133 = arith.mulf %128, %132 : vector<16x128xf32>
    %134 = arith.truncf %133 : vector<16x128xf32> to vector<16x128xbf16>
    %c0_61 = arith.constant 0 : index
    %c0_62 = arith.constant 0 : index
    %135 = vector.load %arg10[%c0_61, %c0_62] : memref<16x256xbf16, #tpu.memory_space<vmem>>, vector<16x128xbf16>
    tpu.vector_store %arg10[%c0_61, %c0_62], %134 {strides = array<i32>} : memref<16x256xbf16, #tpu.memory_space<vmem>>, vector<16x128xbf16>,
    %c0_63 = arith.constant 0 : index
    %c0_64 = arith.constant 0 : index
    %136 = vector.load %arg10[%c0_63, %c0_64] : memref<16x256xbf16, #tpu.memory_space<vmem>>, vector<16x256xbf16>
    %cst_65 = arith.constant dense<0.000000e+00> : vector<16x512xf32>
    %137 = tpu.matmul %136, %3, %cst_65 {dimension_numbers = #tpu.dot_dimension_numbers<[1], [0], [0], [1], [0, 0, 1, 1], [], []>} : vector<16x256xbf16>, vector<256x512xbf16>, vector<16x512xf32> -> vector<16x512xf32>
    %138 = arith.addf %137, %12 : vector<16x512xf32>
    %139 = vector.extract_strided_slice %138 {offsets = [0, 0], sizes = [16, 128], strides = [1, 1]} : vector<16x512xf32> to vector<16x128xf32>
    %cst_66 = arith.constant 5.000000e-01 : f32
    %140 = vector.broadcast %cst_66 : f32 to vector<16x128xf32>
    %141 = arith.mulf %140, %139 : vector<16x128xf32>
    %142 = math.tanh %141 : vector<16x128xf32>
    %cst_67 = arith.constant 5.000000e-01 : f32
    %143 = vector.broadcast %cst_67 : f32 to vector<16x128xf32>
    %144 = arith.mulf %143, %142 : vector<16x128xf32>
    %cst_68 = arith.constant 5.000000e-01 : f32
    %145 = vector.broadcast %cst_68 : f32 to vector<16x128xf32>
    %146 = arith.addf %144, %145 : vector<16x128xf32>
    %147 = vector.extract_strided_slice %138 {offsets = [0, 128], sizes = [16, 128], strides = [1, 1]} : vector<16x512xf32> to vector<16x128xf32>
    %cst_69 = arith.constant 5.000000e-01 : f32
    %148 = vector.broadcast %cst_69 : f32 to vector<16x128xf32>
    %149 = arith.mulf %148, %147 : vector<16x128xf32>
    %150 = math.tanh %149 : vector<16x128xf32>
    %cst_70 = arith.constant 5.000000e-01 : f32
    %151 = vector.broadcast %cst_70 : f32 to vector<16x128xf32>
    %152 = arith.mulf %151, %150 : vector<16x128xf32>
    %cst_71 = arith.constant 5.000000e-01 : f32
    %153 = vector.broadcast %cst_71 : f32 to vector<16x128xf32>
    %154 = arith.addf %152, %153 : vector<16x128xf32>
    %155 = vector.extract_strided_slice %138 {offsets = [0, 256], sizes = [16, 128], strides = [1, 1]} : vector<16x512xf32> to vector<16x128xf32>
    %156 = math.tanh %155 : vector<16x128xf32>
    %157 = vector.extract_strided_slice %138 {offsets = [0, 384], sizes = [16, 128], strides = [1, 1]} : vector<16x512xf32> to vector<16x128xf32>
    %cst_72 = arith.constant 5.000000e-01 : f32
    %158 = vector.broadcast %cst_72 : f32 to vector<16x128xf32>
    %159 = arith.mulf %158, %157 : vector<16x128xf32>
    %160 = math.tanh %159 : vector<16x128xf32>
    %cst_73 = arith.constant 5.000000e-01 : f32
    %161 = vector.broadcast %cst_73 : f32 to vector<16x128xf32>
    %162 = arith.mulf %161, %160 : vector<16x128xf32>
    %cst_74 = arith.constant 5.000000e-01 : f32
    %163 = vector.broadcast %cst_74 : f32 to vector<16x128xf32>
    %164 = arith.addf %162, %163 : vector<16x128xf32>
    %165 = arith.mulf %154, %81 : vector<16x128xf32>
    %166 = arith.mulf %146, %156 : vector<16x128xf32>
    %167 = arith.addf %165, %166 : vector<16x128xf32>
    %168 = math.tanh %167 : vector<16x128xf32>
    %169 = arith.mulf %164, %168 : vector<16x128xf32>
    %170 = arith.truncf %169 : vector<16x128xf32> to vector<16x128xbf16>
    %c0_75 = arith.constant 0 : index
    %c128_76 = arith.constant 128 : index
    %171 = vector.load %arg10[%c0_75, %c128_76] : memref<16x256xbf16, #tpu.memory_space<vmem>>, vector<16x128xbf16>
    tpu.vector_store %arg10[%c0_75, %c128_76], %170 {strides = array<i32>} : memref<16x256xbf16, #tpu.memory_space<vmem>>, vector<16x128xbf16>,
    %cst_77 = arith.constant dense<0.000000e+00> : vector<16x128xf32>
    %172 = tpu.matmul %170, %4, %cst_77 {dimension_numbers = #tpu.dot_dimension_numbers<[1], [0], [0], [1], [0, 0, 1, 1], [], []>} : vector<16x128xbf16>, vector<128x128xbf16>, vector<16x128xf32> -> vector<16x128xf32>
    %173 = vector.broadcast %6 : vector<1x128xf32> to vector<16x128xf32>
    %174 = arith.addf %172, %173 : vector<16x128xf32>
    %cst_78 = arith.constant dense<0xFF800000> : vector<16xf32>
    %175 = vector.multi_reduction <maximumf>, %174, %cst_78 [1] : vector<16x128xf32> to vector<16xf32>
    %176 = vector.shape_cast %175 : vector<16xf32> to vector<16x1xf32>
    %177 = vector.broadcast %176 : vector<16x1xf32> to vector<16x128xf32>
    %178 = arith.subf %174, %177 : vector<16x128xf32>
    %179 = math.exp %178 : vector<16x128xf32>
    %cst_79 = arith.constant dense<0.000000e+00> : vector<16xf32>
    %180 = vector.multi_reduction <add>, %179, %cst_79 [1] : vector<16x128xf32> to vector<16xf32>
    %181 = vector.shape_cast %180 : vector<16xf32> to vector<16x1xf32>
    %182 = tpu.reciprocal %181 : vector<16x1xf32> -> vector<16x1xf32>
    %183 = vector.broadcast %182 : vector<16x1xf32> to vector<16x128xf32>
    %184 = arith.mulf %179, %183 : vector<16x128xf32>
    %c0_80 = arith.constant 0 : index
    %c128_81 = arith.constant 128 : index
    %185 = vector.load %arg9[%c0_80, %c128_81] : memref<16x512xf32, #tpu.memory_space<vmem>>, vector<16x128xf32>
    tpu.vector_store %arg9[%c0_80, %c128_81], %184 {strides = array<i32>} : memref<16x512xf32, #tpu.memory_space<vmem>>, vector<16x128xf32>,
    %c0_82 = arith.constant 0 : index
    %c0_83 = arith.constant 0 : index
    %186 = vector.load %arg10[%c0_82, %c0_83] : memref<16x256xbf16, #tpu.memory_space<vmem>>, vector<16x128xbf16>
    %cst_84 = arith.constant dense<0.000000e+00> : vector<16x512xf32>
    %187 = tpu.matmul %186, %2, %cst_84 {dimension_numbers = #tpu.dot_dimension_numbers<[1], [0], [0], [1], [0, 0, 1, 1], [], []>} : vector<16x128xbf16>, vector<128x512xbf16>, vector<16x512xf32> -> vector<16x512xf32>
    %188 = arith.addf %9, %187 : vector<16x512xf32>
    %189 = vector.extract_strided_slice %188 {offsets = [0, 0], sizes = [16, 128], strides = [1, 1]} : vector<16x512xf32> to vector<16x128xf32>
    %cst_85 = arith.constant 5.000000e-01 : f32
    %190 = vector.broadcast %cst_85 : f32 to vector<16x128xf32>
    %191 = arith.mulf %190, %189 : vector<16x128xf32>
    %192 = math.tanh %191 : vector<16x128xf32>
    %cst_86 = arith.constant 5.000000e-01 : f32
    %193 = vector.broadcast %cst_86 : f32 to vector<16x128xf32>
    %194 = arith.mulf %193, %192 : vector<16x128xf32>
    %cst_87 = arith.constant 5.000000e-01 : f32
    %195 = vector.broadcast %cst_87 : f32 to vector<16x128xf32>
    %196 = arith.addf %194, %195 : vector<16x128xf32>
    %197 = vector.extract_strided_slice %188 {offsets = [0, 128], sizes = [16, 128], strides = [1, 1]} : vector<16x512xf32> to vector<16x128xf32>
    %cst_88 = arith.constant 5.000000e-01 : f32
    %198 = vector.broadcast %cst_88 : f32 to vector<16x128xf32>
    %199 = arith.mulf %198, %197 : vector<16x128xf32>
    %200 = math.tanh %199 : vector<16x128xf32>
    %cst_89 = arith.constant 5.000000e-01 : f32
    %201 = vector.broadcast %cst_89 : f32 to vector<16x128xf32>
    %202 = arith.mulf %201, %200 : vector<16x128xf32>
    %cst_90 = arith.constant 5.000000e-01 : f32
    %203 = vector.broadcast %cst_90 : f32 to vector<16x128xf32>
    %204 = arith.addf %202, %203 : vector<16x128xf32>
    %205 = vector.extract_strided_slice %188 {offsets = [0, 256], sizes = [16, 128], strides = [1, 1]} : vector<16x512xf32> to vector<16x128xf32>
    %206 = math.tanh %205 : vector<16x128xf32>
    %207 = vector.extract_strided_slice %188 {offsets = [0, 384], sizes = [16, 128], strides = [1, 1]} : vector<16x512xf32> to vector<16x128xf32>
    %cst_91 = arith.constant 5.000000e-01 : f32
    %208 = vector.broadcast %cst_91 : f32 to vector<16x128xf32>
    %209 = arith.mulf %208, %207 : vector<16x128xf32>
    %210 = math.tanh %209 : vector<16x128xf32>
    %cst_92 = arith.constant 5.000000e-01 : f32
    %211 = vector.broadcast %cst_92 : f32 to vector<16x128xf32>
    %212 = arith.mulf %211, %210 : vector<16x128xf32>
    %cst_93 = arith.constant 5.000000e-01 : f32
    %213 = vector.broadcast %cst_93 : f32 to vector<16x128xf32>
    %214 = arith.addf %212, %213 : vector<16x128xf32>
    %215 = arith.mulf %204, %131 : vector<16x128xf32>
    %216 = arith.mulf %196, %206 : vector<16x128xf32>
    %217 = arith.addf %215, %216 : vector<16x128xf32>
    %218 = math.tanh %217 : vector<16x128xf32>
    %219 = arith.mulf %214, %218 : vector<16x128xf32>
    %220 = arith.truncf %219 : vector<16x128xf32> to vector<16x128xbf16>
    %c0_94 = arith.constant 0 : index
    %c0_95 = arith.constant 0 : index
    %221 = vector.load %arg10[%c0_94, %c0_95] : memref<16x256xbf16, #tpu.memory_space<vmem>>, vector<16x128xbf16>
    tpu.vector_store %arg10[%c0_94, %c0_95], %220 {strides = array<i32>} : memref<16x256xbf16, #tpu.memory_space<vmem>>, vector<16x128xbf16>,
    %c0_96 = arith.constant 0 : index
    %c0_97 = arith.constant 0 : index
    %222 = vector.load %arg10[%c0_96, %c0_97] : memref<16x256xbf16, #tpu.memory_space<vmem>>, vector<16x256xbf16>
    %cst_98 = arith.constant dense<0.000000e+00> : vector<16x512xf32>
    %223 = tpu.matmul %222, %3, %cst_98 {dimension_numbers = #tpu.dot_dimension_numbers<[1], [0], [0], [1], [0, 0, 1, 1], [], []>} : vector<16x256xbf16>, vector<256x512xbf16>, vector<16x512xf32> -> vector<16x512xf32>
    %224 = arith.addf %223, %12 : vector<16x512xf32>
    %225 = vector.extract_strided_slice %224 {offsets = [0, 0], sizes = [16, 128], strides = [1, 1]} : vector<16x512xf32> to vector<16x128xf32>
    %cst_99 = arith.constant 5.000000e-01 : f32
    %226 = vector.broadcast %cst_99 : f32 to vector<16x128xf32>
    %227 = arith.mulf %226, %225 : vector<16x128xf32>
    %228 = math.tanh %227 : vector<16x128xf32>
    %cst_100 = arith.constant 5.000000e-01 : f32
    %229 = vector.broadcast %cst_100 : f32 to vector<16x128xf32>
    %230 = arith.mulf %229, %228 : vector<16x128xf32>
    %cst_101 = arith.constant 5.000000e-01 : f32
    %231 = vector.broadcast %cst_101 : f32 to vector<16x128xf32>
    %232 = arith.addf %230, %231 : vector<16x128xf32>
    %233 = vector.extract_strided_slice %224 {offsets = [0, 128], sizes = [16, 128], strides = [1, 1]} : vector<16x512xf32> to vector<16x128xf32>
    %cst_102 = arith.constant 5.000000e-01 : f32
    %234 = vector.broadcast %cst_102 : f32 to vector<16x128xf32>
    %235 = arith.mulf %234, %233 : vector<16x128xf32>
    %236 = math.tanh %235 : vector<16x128xf32>
    %cst_103 = arith.constant 5.000000e-01 : f32
    %237 = vector.broadcast %cst_103 : f32 to vector<16x128xf32>
    %238 = arith.mulf %237, %236 : vector<16x128xf32>
    %cst_104 = arith.constant 5.000000e-01 : f32
    %239 = vector.broadcast %cst_104 : f32 to vector<16x128xf32>
    %240 = arith.addf %238, %239 : vector<16x128xf32>
    %241 = vector.extract_strided_slice %224 {offsets = [0, 256], sizes = [16, 128], strides = [1, 1]} : vector<16x512xf32> to vector<16x128xf32>
    %242 = math.tanh %241 : vector<16x128xf32>
    %243 = vector.extract_strided_slice %224 {offsets = [0, 384], sizes = [16, 128], strides = [1, 1]} : vector<16x512xf32> to vector<16x128xf32>
    %cst_105 = arith.constant 5.000000e-01 : f32
    %244 = vector.broadcast %cst_105 : f32 to vector<16x128xf32>
    %245 = arith.mulf %244, %243 : vector<16x128xf32>
    %246 = math.tanh %245 : vector<16x128xf32>
    %cst_106 = arith.constant 5.000000e-01 : f32
    %247 = vector.broadcast %cst_106 : f32 to vector<16x128xf32>
    %248 = arith.mulf %247, %246 : vector<16x128xf32>
    %cst_107 = arith.constant 5.000000e-01 : f32
    %249 = vector.broadcast %cst_107 : f32 to vector<16x128xf32>
    %250 = arith.addf %248, %249 : vector<16x128xf32>
    %251 = arith.mulf %240, %167 : vector<16x128xf32>
    %252 = arith.mulf %232, %242 : vector<16x128xf32>
    %253 = arith.addf %251, %252 : vector<16x128xf32>
    %254 = math.tanh %253 : vector<16x128xf32>
    %255 = arith.mulf %250, %254 : vector<16x128xf32>
    %256 = arith.truncf %255 : vector<16x128xf32> to vector<16x128xbf16>
    %c0_108 = arith.constant 0 : index
    %c128_109 = arith.constant 128 : index
    %257 = vector.load %arg10[%c0_108, %c128_109] : memref<16x256xbf16, #tpu.memory_space<vmem>>, vector<16x128xbf16>
    tpu.vector_store %arg10[%c0_108, %c128_109], %256 {strides = array<i32>} : memref<16x256xbf16, #tpu.memory_space<vmem>>, vector<16x128xbf16>,
    %cst_110 = arith.constant dense<0.000000e+00> : vector<16x128xf32>
    %258 = tpu.matmul %256, %4, %cst_110 {dimension_numbers = #tpu.dot_dimension_numbers<[1], [0], [0], [1], [0, 0, 1, 1], [], []>} : vector<16x128xbf16>, vector<128x128xbf16>, vector<16x128xf32> -> vector<16x128xf32>
    %259 = vector.broadcast %6 : vector<1x128xf32> to vector<16x128xf32>
    %260 = arith.addf %258, %259 : vector<16x128xf32>
    %cst_111 = arith.constant dense<0xFF800000> : vector<16xf32>
    %261 = vector.multi_reduction <maximumf>, %260, %cst_111 [1] : vector<16x128xf32> to vector<16xf32>
    %262 = vector.shape_cast %261 : vector<16xf32> to vector<16x1xf32>
    %263 = vector.broadcast %262 : vector<16x1xf32> to vector<16x128xf32>
    %264 = arith.subf %260, %263 : vector<16x128xf32>
    %265 = math.exp %264 : vector<16x128xf32>
    %cst_112 = arith.constant dense<0.000000e+00> : vector<16xf32>
    %266 = vector.multi_reduction <add>, %265, %cst_112 [1] : vector<16x128xf32> to vector<16xf32>
    %267 = vector.shape_cast %266 : vector<16xf32> to vector<16x1xf32>
    %268 = tpu.reciprocal %267 : vector<16x1xf32> -> vector<16x1xf32>
    %269 = vector.broadcast %268 : vector<16x1xf32> to vector<16x128xf32>
    %270 = arith.mulf %265, %269 : vector<16x128xf32>
    %c0_113 = arith.constant 0 : index
    %c256 = arith.constant 256 : index
    %271 = vector.load %arg9[%c0_113, %c256] : memref<16x512xf32, #tpu.memory_space<vmem>>, vector<16x128xf32>
    tpu.vector_store %arg9[%c0_113, %c256], %270 {strides = array<i32>} : memref<16x512xf32, #tpu.memory_space<vmem>>, vector<16x128xf32>,
    %c0_114 = arith.constant 0 : index
    %c0_115 = arith.constant 0 : index
    %272 = vector.load %arg10[%c0_114, %c0_115] : memref<16x256xbf16, #tpu.memory_space<vmem>>, vector<16x128xbf16>
    %cst_116 = arith.constant dense<0.000000e+00> : vector<16x512xf32>
    %273 = tpu.matmul %272, %2, %cst_116 {dimension_numbers = #tpu.dot_dimension_numbers<[1], [0], [0], [1], [0, 0, 1, 1], [], []>} : vector<16x128xbf16>, vector<128x512xbf16>, vector<16x512xf32> -> vector<16x512xf32>
    %274 = arith.addf %9, %273 : vector<16x512xf32>
    %275 = vector.extract_strided_slice %274 {offsets = [0, 0], sizes = [16, 128], strides = [1, 1]} : vector<16x512xf32> to vector<16x128xf32>
    %cst_117 = arith.constant 5.000000e-01 : f32
    %276 = vector.broadcast %cst_117 : f32 to vector<16x128xf32>
    %277 = arith.mulf %276, %275 : vector<16x128xf32>
    %278 = math.tanh %277 : vector<16x128xf32>
    %cst_118 = arith.constant 5.000000e-01 : f32
    %279 = vector.broadcast %cst_118 : f32 to vector<16x128xf32>
    %280 = arith.mulf %279, %278 : vector<16x128xf32>
    %cst_119 = arith.constant 5.000000e-01 : f32
    %281 = vector.broadcast %cst_119 : f32 to vector<16x128xf32>
    %282 = arith.addf %280, %281 : vector<16x128xf32>
    %283 = vector.extract_strided_slice %274 {offsets = [0, 128], sizes = [16, 128], strides = [1, 1]} : vector<16x512xf32> to vector<16x128xf32>
    %cst_120 = arith.constant 5.000000e-01 : f32
    %284 = vector.broadcast %cst_120 : f32 to vector<16x128xf32>
    %285 = arith.mulf %284, %283 : vector<16x128xf32>
    %286 = math.tanh %285 : vector<16x128xf32>
    %cst_121 = arith.constant 5.000000e-01 : f32
    %287 = vector.broadcast %cst_121 : f32 to vector<16x128xf32>
    %288 = arith.mulf %287, %286 : vector<16x128xf32>
    %cst_122 = arith.constant 5.000000e-01 : f32
    %289 = vector.broadcast %cst_122 : f32 to vector<16x128xf32>
    %290 = arith.addf %288, %289 : vector<16x128xf32>
    %291 = vector.extract_strided_slice %274 {offsets = [0, 256], sizes = [16, 128], strides = [1, 1]} : vector<16x512xf32> to vector<16x128xf32>
    %292 = math.tanh %291 : vector<16x128xf32>
    %293 = vector.extract_strided_slice %274 {offsets = [0, 384], sizes = [16, 128], strides = [1, 1]} : vector<16x512xf32> to vector<16x128xf32>
    %cst_123 = arith.constant 5.000000e-01 : f32
    %294 = vector.broadcast %cst_123 : f32 to vector<16x128xf32>
    %295 = arith.mulf %294, %293 : vector<16x128xf32>
    %296 = math.tanh %295 : vector<16x128xf32>
    %cst_124 = arith.constant 5.000000e-01 : f32
    %297 = vector.broadcast %cst_124 : f32 to vector<16x128xf32>
    %298 = arith.mulf %297, %296 : vector<16x128xf32>
    %cst_125 = arith.constant 5.000000e-01 : f32
    %299 = vector.broadcast %cst_125 : f32 to vector<16x128xf32>
    %300 = arith.addf %298, %299 : vector<16x128xf32>
    %301 = arith.mulf %290, %217 : vector<16x128xf32>
    %302 = arith.mulf %282, %292 : vector<16x128xf32>
    %303 = arith.addf %301, %302 : vector<16x128xf32>
    %304 = math.tanh %303 : vector<16x128xf32>
    %305 = arith.mulf %300, %304 : vector<16x128xf32>
    %306 = arith.truncf %305 : vector<16x128xf32> to vector<16x128xbf16>
    %c0_126 = arith.constant 0 : index
    %c0_127 = arith.constant 0 : index
    %307 = vector.load %arg10[%c0_126, %c0_127] : memref<16x256xbf16, #tpu.memory_space<vmem>>, vector<16x128xbf16>
    tpu.vector_store %arg10[%c0_126, %c0_127], %306 {strides = array<i32>} : memref<16x256xbf16, #tpu.memory_space<vmem>>, vector<16x128xbf16>,
    %c0_128 = arith.constant 0 : index
    %c0_129 = arith.constant 0 : index
    %308 = vector.load %arg10[%c0_128, %c0_129] : memref<16x256xbf16, #tpu.memory_space<vmem>>, vector<16x256xbf16>
    %cst_130 = arith.constant dense<0.000000e+00> : vector<16x512xf32>
    %309 = tpu.matmul %308, %3, %cst_130 {dimension_numbers = #tpu.dot_dimension_numbers<[1], [0], [0], [1], [0, 0, 1, 1], [], []>} : vector<16x256xbf16>, vector<256x512xbf16>, vector<16x512xf32> -> vector<16x512xf32>
    %310 = arith.addf %309, %12 : vector<16x512xf32>
    %311 = vector.extract_strided_slice %310 {offsets = [0, 0], sizes = [16, 128], strides = [1, 1]} : vector<16x512xf32> to vector<16x128xf32>
    %cst_131 = arith.constant 5.000000e-01 : f32
    %312 = vector.broadcast %cst_131 : f32 to vector<16x128xf32>
    %313 = arith.mulf %312, %311 : vector<16x128xf32>
    %314 = math.tanh %313 : vector<16x128xf32>
    %cst_132 = arith.constant 5.000000e-01 : f32
    %315 = vector.broadcast %cst_132 : f32 to vector<16x128xf32>
    %316 = arith.mulf %315, %314 : vector<16x128xf32>
    %cst_133 = arith.constant 5.000000e-01 : f32
    %317 = vector.broadcast %cst_133 : f32 to vector<16x128xf32>
    %318 = arith.addf %316, %317 : vector<16x128xf32>
    %319 = vector.extract_strided_slice %310 {offsets = [0, 128], sizes = [16, 128], strides = [1, 1]} : vector<16x512xf32> to vector<16x128xf32>
    %cst_134 = arith.constant 5.000000e-01 : f32
    %320 = vector.broadcast %cst_134 : f32 to vector<16x128xf32>
    %321 = arith.mulf %320, %319 : vector<16x128xf32>
    %322 = math.tanh %321 : vector<16x128xf32>
    %cst_135 = arith.constant 5.000000e-01 : f32
    %323 = vector.broadcast %cst_135 : f32 to vector<16x128xf32>
    %324 = arith.mulf %323, %322 : vector<16x128xf32>
    %cst_136 = arith.constant 5.000000e-01 : f32
    %325 = vector.broadcast %cst_136 : f32 to vector<16x128xf32>
    %326 = arith.addf %324, %325 : vector<16x128xf32>
    %327 = vector.extract_strided_slice %310 {offsets = [0, 256], sizes = [16, 128], strides = [1, 1]} : vector<16x512xf32> to vector<16x128xf32>
    %328 = math.tanh %327 : vector<16x128xf32>
    %329 = vector.extract_strided_slice %310 {offsets = [0, 384], sizes = [16, 128], strides = [1, 1]} : vector<16x512xf32> to vector<16x128xf32>
    %cst_137 = arith.constant 5.000000e-01 : f32
    %330 = vector.broadcast %cst_137 : f32 to vector<16x128xf32>
    %331 = arith.mulf %330, %329 : vector<16x128xf32>
    %332 = math.tanh %331 : vector<16x128xf32>
    %cst_138 = arith.constant 5.000000e-01 : f32
    %333 = vector.broadcast %cst_138 : f32 to vector<16x128xf32>
    %334 = arith.mulf %333, %332 : vector<16x128xf32>
    %cst_139 = arith.constant 5.000000e-01 : f32
    %335 = vector.broadcast %cst_139 : f32 to vector<16x128xf32>
    %336 = arith.addf %334, %335 : vector<16x128xf32>
    %337 = arith.mulf %326, %253 : vector<16x128xf32>
    %338 = arith.mulf %318, %328 : vector<16x128xf32>
    %339 = arith.addf %337, %338 : vector<16x128xf32>
    %340 = math.tanh %339 : vector<16x128xf32>
    %341 = arith.mulf %336, %340 : vector<16x128xf32>
    %342 = arith.truncf %341 : vector<16x128xf32> to vector<16x128xbf16>
    %c0_140 = arith.constant 0 : index
    %c128_141 = arith.constant 128 : index
    %343 = vector.load %arg10[%c0_140, %c128_141] : memref<16x256xbf16, #tpu.memory_space<vmem>>, vector<16x128xbf16>
    tpu.vector_store %arg10[%c0_140, %c128_141], %342 {strides = array<i32>} : memref<16x256xbf16, #tpu.memory_space<vmem>>, vector<16x128xbf16>,
    %cst_142 = arith.constant dense<0.000000e+00> : vector<16x128xf32>
    %344 = tpu.matmul %342, %4, %cst_142 {dimension_numbers = #tpu.dot_dimension_numbers<[1], [0], [0], [1], [0, 0, 1, 1], [], []>} : vector<16x128xbf16>, vector<128x128xbf16>, vector<16x128xf32> -> vector<16x128xf32>
    %345 = vector.broadcast %6 : vector<1x128xf32> to vector<16x128xf32>
    %346 = arith.addf %344, %345 : vector<16x128xf32>
    %cst_143 = arith.constant dense<0xFF800000> : vector<16xf32>
    %347 = vector.multi_reduction <maximumf>, %346, %cst_143 [1] : vector<16x128xf32> to vector<16xf32>
    %348 = vector.shape_cast %347 : vector<16xf32> to vector<16x1xf32>
    %349 = vector.broadcast %348 : vector<16x1xf32> to vector<16x128xf32>
    %350 = arith.subf %346, %349 : vector<16x128xf32>
    %351 = math.exp %350 : vector<16x128xf32>
    %cst_144 = arith.constant dense<0.000000e+00> : vector<16xf32>
    %352 = vector.multi_reduction <add>, %351, %cst_144 [1] : vector<16x128xf32> to vector<16xf32>
    %353 = vector.shape_cast %352 : vector<16xf32> to vector<16x1xf32>
    %354 = tpu.reciprocal %353 : vector<16x1xf32> -> vector<16x1xf32>
    %355 = vector.broadcast %354 : vector<16x1xf32> to vector<16x128xf32>
    %356 = arith.mulf %351, %355 : vector<16x128xf32>
    %c0_145 = arith.constant 0 : index
    %c384 = arith.constant 384 : index
    %357 = vector.load %arg9[%c0_145, %c384] : memref<16x512xf32, #tpu.memory_space<vmem>>, vector<16x128xf32>
    tpu.vector_store %arg9[%c0_145, %c384], %356 {strides = array<i32>} : memref<16x512xf32, #tpu.memory_space<vmem>>, vector<16x128xf32>,
    return
  }
  func.func @transform_0(%arg0: i32) -> (i32, i32) {
    %c0_i32 = arith.constant 0 : i32
    %c0_i32_0 = arith.constant 0 : i32
    return %arg0, %c0_i32 : i32, i32
  }
  func.func @transform_1(%arg0: i32) -> (i32, i32) {
    %c0_i32 = arith.constant 0 : i32
    %c0_i32_0 = arith.constant 0 : i32
    %c0_i32_1 = arith.constant 0 : i32
    return %c0_i32, %c0_i32_0 : i32, i32
  }
  func.func @transform_2(%arg0: i32) -> (i32, i32) {
    %c0_i32 = arith.constant 0 : i32
    %c0_i32_0 = arith.constant 0 : i32
    %c0_i32_1 = arith.constant 0 : i32
    return %c0_i32, %c0_i32_0 : i32, i32
  }
  func.func @transform_3(%arg0: i32) -> (i32, i32) {
    %c0_i32 = arith.constant 0 : i32
    %c0_i32_0 = arith.constant 0 : i32
    %c0_i32_1 = arith.constant 0 : i32
    return %c0_i32, %c0_i32_0 : i32, i32
  }
  func.func @transform_4(%arg0: i32) -> (i32, i32) {
    %c0_i32 = arith.constant 0 : i32
    %c0_i32_0 = arith.constant 0 : i32
    %c0_i32_1 = arith.constant 0 : i32
    return %c0_i32, %c0_i32_0 : i32, i32
  }
  func.func @transform_5(%arg0: i32) -> (i32, i32) {
    %c0_i32 = arith.constant 0 : i32
    %c0_i32_0 = arith.constant 0 : i32
    %c0_i32_1 = arith.constant 0 : i32
    return %c0_i32, %c0_i32_0 : i32, i32
  }
  func.func @transform_6(%arg0: i32) -> (i32, i32) {
    %c0_i32 = arith.constant 0 : i32
    %c0_i32_0 = arith.constant 0 : i32
    %c0_i32_1 = arith.constant 0 : i32
    return %c0_i32, %c0_i32_0 : i32, i32
  }
  func.func @transform_7(%arg0: i32) -> (i32, i32) {
    %c0_i32 = arith.constant 0 : i32
    %c0_i32_0 = arith.constant 0 : i32
    %c0_i32_1 = arith.constant 0 : i32
    return %c0_i32, %c0_i32_0 : i32, i32
  }
  func.func @transform_8(%arg0: i32) -> (i32, i32) {
    %c0_i32 = arith.constant 0 : i32
    %c0_i32_0 = arith.constant 0 : i32
    return %arg0, %c0_i32 : i32, i32
  }
}

</mosaic_0001>

<llo_original>
// kernel: tpu_custom_call.1
$region0: #{tpu_custom_call.1}
  #allocation0 [shape = 'u32[]', space=smem, size = 0x4, offset = 0x4, fixed_abs, tag = 'smem constant byte address 0x4 - core index']
  #allocation1 [shape = 'u32[144,128]{1,0:T(1,128)}', space=vmem, size = 0x12000, scoped, tag = 'internal scratch']
  #allocation2 [shape = 'bf16[16,256]{1,0:T(16,128)(2,1)}', space=vmem, size = 0x2000, scoped, tag = 'scratch operand']
  %s0 = inlined_call_operand.hbm [shape: bf16[16,128], index: 0, kind: input, shape index: {}]
  %s1 = inlined_call_operand.hbm [shape: bf16[128,512], index: 1, kind: input, shape index: {}]
  %s2 = inlined_call_operand.hbm [shape: bf16[128,512], index: 2, kind: input, shape index: {}]
  %s3 = inlined_call_operand.hbm [shape: bf16[256,512], index: 3, kind: input, shape index: {}]
  %s4 = inlined_call_operand.vmem [shape: f32[1,512], index: 4, kind: input, shape index: {}]
  %s5 = inlined_call_operand.vmem [shape: f32[1,512], index: 5, kind: input, shape index: {}]
  %s6 = inlined_call_operand.hbm [shape: bf16[128,128], index: 6, kind: input, shape index: {}]
  %s7 = inlined_call_operand.vmem [shape: f32[1,128], index: 7, kind: input, shape index: {}]
  %s8 = inlined_call_operand.hbm [shape: f32[16,512], index: 8, kind: output, shape index: {}]
  %s9 = sld [smem:[#allocation0]]
  $region62: #{tpu_custom_call.1} parent=0
    _
  %s11 = ssub.s32 1, %s9
  %s12 = scalar_select 0, %s11, %s9
  $region1: #{tpu_custom_call.1} parent=0
    #allocation3 [shape = 'u8[4096]{0}', space=vmem, size = 0x1000, scoped, tag = 'input window, operand 0, single buffered']
    #allocation4 [shape = 's32[1]{0}', space=sflag, size = 0x4, scoped, tag = 'scoped memory for tpu_custom_call.1']
    #allocation5 [shape = 's32[1]{0}', space=sflag, size = 0x4, scoped, tag = 'scoped memory for tpu_custom_call.1']
    #allocation6 [shape = 'u8[131072]{0}', space=vmem, size = 0x20000, scoped, tag = 'input window, operand 1, single buffered']
    #allocation7 [shape = 's32[1]{0}', space=sflag, size = 0x4, scoped, tag = 'scoped memory for tpu_custom_call.1']
    #allocation8 [shape = 'u8[131072]{0}', space=vmem, size = 0x20000, scoped, tag = 'input window, operand 2, single buffered']
    #allocation9 [shape = 'u8[262144]{0}', space=vmem, size = 0x40000, scoped, tag = 'input window, operand 3, single buffered']
    #allocation10 [shape = 's32[1]{0}', space=sflag, size = 0x4, scoped, tag = 'scoped memory for tpu_custom_call.1']
    #allocation11 [shape = 'u8[32768]{0}', space=vmem, size = 0x8000, scoped, tag = 'input window, operand 6, single buffered']
    #allocation12 [shape = 'u8[32768]{0}', space=vmem, size = 0x8000, scoped, tag = 'output window, operand 0, single buffered']
    %13 = vsyncpa [#allocation4], 0
    %14 = vsyncpa [#allocation7], 0
    %15 = vsyncpa [#allocation10], 0
    %16 = vsyncpa [#allocation5], 0
    // Predicated region
    $region2: #{tpu_custom_call.1} parent=1 // pred_check
      _
    $region3: #{tpu_custom_call.1} parent=1 // pred_check_branch
      %18 = sbr.rel (0) target = $region5
    $region4: #{tpu_custom_call.1} parent=1 // pred_region
      %s20 = ssub.s32 128, 128
      %21 = vsyncadd [#allocation4], %s20
      %s22 = sshll.u32 [#allocation3], 4
      %s23 = int_to_ptr.vmem [resolvable:$true] %s22
      %28 = dma.hbm_to_vmem [thread:$0]  %s0, 128, %s23, [#allocation4], 64, 64, 4
    $region5: #{tpu_custom_call.1} parent=1 // pred_fallthru
      _
    // Predicated region
    $region6: #{tpu_custom_call.1} parent=1 // pred_check
      _
    $region7: #{tpu_custom_call.1} parent=1 // pred_check_branch
      %30 = sbr.rel (0) target = $region9
    $region8: #{tpu_custom_call.1} parent=1 // pred_region
      %s32 = ssub.s32 4096, 4096
      %33 = vsyncadd [#allocation7], %s32
      %s34 = sshll.u32 [#allocation6], 4
      %s35 = int_to_ptr.vmem [resolvable:$true] %s34
      %40 = dma.hbm_to_vmem [thread:$0]  %s1, 4096, %s35, [#allocation7], 256, 256, 16
    $region9: #{tpu_custom_call.1} parent=1 // pred_fallthru
      _
    // Predicated region
    $region10: #{tpu_custom_call.1} parent=1 // pred_check
      _
    $region11: #{tpu_custom_call.1} parent=1 // pred_check_branch
      %42 = sbr.rel (0) target = $region13
    $region12: #{tpu_custom_call.1} parent=1 // pred_region
      %s44 = ssub.s32 4096, 4096
      %45 = vsyncadd [#allocation7], %s44
      %s46 = sshll.u32 [#allocation8], 4
      %s47 = int_to_ptr.vmem [resolvable:$true] %s46
      %52 = dma.hbm_to_vmem [thread:$0]  %s2, 4096, %s47, [#allocation7], 256, 256, 16
    $region13: #{tpu_custom_call.1} parent=1 // pred_fallthru
      _
    // Predicated region
    $region14: #{tpu_custom_call.1} parent=1 // pred_check
      _
    $region15: #{tpu_custom_call.1} parent=1 // pred_check_branch
      %54 = sbr.rel (0) target = $region17
    $region16: #{tpu_custom_call.1} parent=1 // pred_region
      %s56 = ssub.s32 8192, 8192
      %57 = vsyncadd [#allocation10], %s56
      %s58 = sshll.u32 [#allocation9], 4
      %s59 = int_to_ptr.vmem [resolvable:$true] %s58
      %64 = dma.hbm_to_vmem [thread:$0]  %s3, 8192, %s59, [#allocation10], 256, 256, 16
    $region17: #{tpu_custom_call.1} parent=1 // pred_fallthru
      _
    // Predicated region
    $region18: #{tpu_custom_call.1} parent=1 // pred_check
      _
    $region19: #{tpu_custom_call.1} parent=1 // pred_check_branch
      %66 = sbr.rel (0) target = $region21
    $region20: #{tpu_custom_call.1} parent=1 // pred_region
      _
    $region21: #{tpu_custom_call.1} parent=1 // pred_fallthru
      _
    // Predicated region
    $region22: #{tpu_custom_call.1} parent=1 // pred_check
      _
    $region23: #{tpu_custom_call.1} parent=1 // pred_check_branch
      %68 = sbr.rel (0) target = $region25
    $region24: #{tpu_custom_call.1} parent=1 // pred_region
      _
    $region25: #{tpu_custom_call.1} parent=1 // pred_fallthru
      _
    // Predicated region
    $region26: #{tpu_custom_call.1} parent=1 // pred_check
      _
    $region27: #{tpu_custom_call.1} parent=1 // pred_check_branch
      %70 = sbr.rel (0) target = $region29
    $region28: #{tpu_custom_call.1} parent=1 // pred_region
      %s72 = ssub.s32 1024, 1024
      %73 = vsyncadd [#allocation10], %s72
      %s74 = sshll.u32 [#allocation11], 4
      %s75 = int_to_ptr.vmem [resolvable:$true] %s74
      %80 = dma.hbm_to_vmem [thread:$0]  %s6, 1024, %s75, [#allocation10], 64, 64, 4
    $region29: #{tpu_custom_call.1} parent=1 // pred_fallthru
      _
    // Predicated region
    $region30: #{tpu_custom_call.1} parent=1 // pred_check
      _
    $region31: #{tpu_custom_call.1} parent=1 // pred_check_branch
      %82 = sbr.rel (0) target = $region33
    $region32: #{tpu_custom_call.1} parent=1 // pred_region
      _
    $region33: #{tpu_custom_call.1} parent=1 // pred_fallthru
      _
    // Predicated region
    $region34: #{tpu_custom_call.1} parent=1 // pred_check
      _
    $region35: #{tpu_custom_call.1} parent=1 // pred_check_branch
      %84 = sbr.rel (0) target = $region37
    $region36: #{tpu_custom_call.1} parent=1 // pred_region
      %85 = dma.done [#allocation4], 128
    $region37: #{tpu_custom_call.1} parent=1 // pred_fallthru
      _
    // Predicated region
    $region38: #{tpu_custom_call.1} parent=1 // pred_check
      _
    $region39: #{tpu_custom_call.1} parent=1 // pred_check_branch
      %87 = sbr.rel (0) target = $region41
    $region40: #{tpu_custom_call.1} parent=1 // pred_region
      %88 = dma.done [#allocation7], 4096
    $region41: #{tpu_custom_call.1} parent=1 // pred_fallthru
      _
    // Predicated region
    $region42: #{tpu_custom_call.1} parent=1 // pred_check
      _
    $region43: #{tpu_custom_call.1} parent=1 // pred_check_branch
      %90 = sbr.rel (0) target = $region45
    $region44: #{tpu_custom_call.1} parent=1 // pred_region
      %91 = dma.done [#allocation7], 4096
    $region45: #{tpu_custom_call.1} parent=1 // pred_fallthru
      _
    // Predicated region
    $region46: #{tpu_custom_call.1} parent=1 // pred_check
      _
    $region47: #{tpu_custom_call.1} parent=1 // pred_check_branch
      %93 = sbr.rel (0) target = $region49
    $region48: #{tpu_custom_call.1} parent=1 // pred_region
      %94 = dma.done [#allocation10], 8192
    $region49: #{tpu_custom_call.1} parent=1 // pred_fallthru
      _
    // Predicated region
    $region50: #{tpu_custom_call.1} parent=1 // pred_check
      _
    $region51: #{tpu_custom_call.1} parent=1 // pred_check_branch
      %96 = sbr.rel (0) target = $region53
    $region52: #{tpu_custom_call.1} parent=1 // pred_region
      %97 = dma.done [#allocation10], 1024
    $region53: #{tpu_custom_call.1} parent=1 // pred_fallthru
      _
    %v99 = vld [vmem:[#allocation3] sm:$0xf]
    %v100 = vld [vmem:[#allocation3 + $0x4] sm:$0xf]
    %v101 = vld [vmem:[#allocation6] sm:$0xff]
    %v102 = vld [vmem:[#allocation6 + $0x8] sm:$0xff]
    %v103 = vld [vmem:[#allocation6 + $0x10] sm:$0xff]
    %v104 = vld [vmem:[#allocation6 + $0x18] sm:$0xff]
    %v105 = vld [vmem:[#allocation6 + $0x20] sm:$0xff]
    %v106 = vld [vmem:[#allocation6 + $0x28] sm:$0xff]
    %v107 = vld [vmem:[#allocation6 + $0x30] sm:$0xff]
    %v108 = vld [vmem:[#allocation6 + $0x38] sm:$0xff]
    %v109 = vld [vmem:[#allocation6 + $0x40] sm:$0xff]
    %v110 = vld [vmem:[#allocation6 + $0x48] sm:$0xff]
    %v111 = vld [vmem:[#allocation6 + $0x50] sm:$0xff]
    %v112 = vld [vmem:[#allocation6 + $0x58] sm:$0xff]
    %v113 = vld [vmem:[#allocation6 + $0x60] sm:$0xff]
    %v114 = vld [vmem:[#allocation6 + $0x68] sm:$0xff]
    %v115 = vld [vmem:[#allocation6 + $0x70] sm:$0xff]
    %v116 = vld [vmem:[#allocation6 + $0x78] sm:$0xff]
    %v117 = vld [vmem:[#allocation6 + $0x80] sm:$0xff]
    %v118 = vld [vmem:[#allocation6 + $0x88] sm:$0xff]
    %v119 = vld [vmem:[#allocation6 + $0x90] sm:$0xff]
    %v120 = vld [vmem:[#allocation6 + $0x98] sm:$0xff]
    %v121 = vld [vmem:[#allocation6 + $0xa0] sm:$0xff]
    %v122 = vld [vmem:[#allocation6 + $0xa8] sm:$0xff]
    %v123 = vld [vmem:[#allocation6 + $0xb0] sm:$0xff]
    %v124 = vld [vmem:[#allocation6 + $0xb8] sm:$0xff]
    %v125 = vld [vmem:[#allocation6 + $0xc0] sm:$0xff]
    %v126 = vld [vmem:[#allocation6 + $0xc8] sm:$0xff]
    %v127 = vld [vmem:[#allocation6 + $0xd0] sm:$0xff]
    %v128 = vld [vmem:[#allocation6 + $0xd8] sm:$0xff]
    %v129 = vld [vmem:[#allocation6 + $0xe0] sm:$0xff]
    %v130 = vld [vmem:[#allocation6 + $0xe8] sm:$0xff]
    %v131 = vld [vmem:[#allocation6 + $0xf0] sm:$0xff]
    %v132 = vld [vmem:[#allocation6 + $0xf8] sm:$0xff]
    %v133 = vld [vmem:[#allocation8] sm:$0xff]
    %v134 = vld [vmem:[#allocation8 + $0x8] sm:$0xff]
    %v135 = vld [vmem:[#allocation8 + $0x10] sm:$0xff]
    %v136 = vld [vmem:[#allocation8 + $0x18] sm:$0xff]
    %v137 = vld [vmem:[#allocation8 + $0x20] sm:$0xff]
    %v138 = vld [vmem:[#allocation8 + $0x28] sm:$0xff]
    %v139 = vld [vmem:[#allocation8 + $0x30] sm:$0xff]
    %v140 = vld [vmem:[#allocation8 + $0x38] sm:$0xff]
    %v141 = vld [vmem:[#allocation8 + $0x40] sm:$0xff]
    %v142 = vld [vmem:[#allocation8 + $0x48] sm:$0xff]
    %v143 = vld [vmem:[#allocation8 + $0x50] sm:$0xff]
    %v144 = vld [vmem:[#allocation8 + $0x58] sm:$0xff]
    %v145 = vld [vmem:[#allocation8 + $0x60] sm:$0xff]
    %v146 = vld [vmem:[#allocation8 + $0x68] sm:$0xff]
    %v147 = vld [vmem:[#allocation8 + $0x70] sm:$0xff]
    %v148 = vld [vmem:[#allocation8 + $0x78] sm:$0xff]
    %v149 = vld [vmem:[#allocation8 + $0x80] sm:$0xff]
    %v150 = vld [vmem:[#allocation8 + $0x88] sm:$0xff]
    %v151 = vld [vmem:[#allocation8 + $0x90] sm:$0xff]
    %v152 = vld [vmem:[#allocation8 + $0x98] sm:$0xff]
    %v153 = vld [vmem:[#allocation8 + $0xa0] sm:$0xff]
    %v154 = vld [vmem:[#allocation8 + $0xa8] sm:$0xff]
    %v155 = vld [vmem:[#allocation8 + $0xb0] sm:$0xff]
    %v156 = vld [vmem:[#allocation8 + $0xb8] sm:$0xff]
    %v157 = vld [vmem:[#allocation8 + $0xc0] sm:$0xff]
    %v158 = vld [vmem:[#allocation8 + $0xc8] sm:$0xff]
    %v159 = vld [vmem:[#allocation8 + $0xd0] sm:$0xff]
    %v160 = vld [vmem:[#allocation8 + $0xd8] sm:$0xff]
    %v161 = vld [vmem:[#allocation8 + $0xe0] sm:$0xff]
    %v162 = vld [vmem:[#allocation8 + $0xe8] sm:$0xff]
    %v163 = vld [vmem:[#allocation8 + $0xf0] sm:$0xff]
    %v164 = vld [vmem:[#allocation8 + $0xf8] sm:$0xff]
    %v165 = vld [vmem:[#allocation9] sm:$0xff]
    %v166 = vld [vmem:[#allocation9 + $0x8] sm:$0xff]
    %v167 = vld [vmem:[#allocation9 + $0x10] sm:$0xff]
    %v168 = vld [vmem:[#allocation9 + $0x18] sm:$0xff]
    %v169 = vld [vmem:[#allocation9 + $0x20] sm:$0xff]
    %v170 = vld [vmem:[#allocation9 + $0x28] sm:$0xff]
    %v171 = vld [vmem:[#allocation9 + $0x30] sm:$0xff]
    %v172 = vld [vmem:[#allocation9 + $0x38] sm:$0xff]
    %v173 = vld [vmem:[#allocation9 + $0x40] sm:$0xff]
    %v174 = vld [vmem:[#allocation9 + $0x48] sm:$0xff]
    %v175 = vld [vmem:[#allocation9 + $0x50] sm:$0xff]
    %v176 = vld [vmem:[#allocation9 + $0x58] sm:$0xff]
    %v177 = vld [vmem:[#allocation9 + $0x60] sm:$0xff]
    %v178 = vld [vmem:[#allocation9 + $0x68] sm:$0xff]
    %v179 = vld [vmem:[#allocation9 + $0x70] sm:$0xff]
    %v180 = vld [vmem:[#allocation9 + $0x78] sm:$0xff]
    %v181 = vld [vmem:[#allocation9 + $0x80] sm:$0xff]
    %v182 = vld [vmem:[#allocation9 + $0x88] sm:$0xff]
    %v183 = vld [vmem:[#allocation9 + $0x90] sm:$0xff]
    %v184 = vld [vmem:[#allocation9 + $0x98] sm:$0xff]
    %v185 = vld [vmem:[#allocation9 + $0xa0] sm:$0xff]
    %v186 = vld [vmem:[#allocation9 + $0xa8] sm:$0xff]
    %v187 = vld [vmem:[#allocation9 + $0xb0] sm:$0xff]
    %v188 = vld [vmem:[#allocation9 + $0xb8] sm:$0xff]
    %v189 = vld [vmem:[#allocation9 + $0xc0] sm:$0xff]
    %v190 = vld [vmem:[#allocation9 + $0xc8] sm:$0xff]
    %v191 = vld [vmem:[#allocation9 + $0xd0] sm:$0xff]
    %v192 = vld [vmem:[#allocation9 + $0xd8] sm:$0xff]
    %v193 = vld [vmem:[#allocation9 + $0xe0] sm:$0xff]
    %v194 = vld [vmem:[#allocation9 + $0xe8] sm:$0xff]
    %v195 = vld [vmem:[#allocation9 + $0xf0] sm:$0xff]
    %v196 = vld [vmem:[#allocation9 + $0xf8] sm:$0xff]
    %v197 = vld [vmem:[#allocation9 + $0x100] sm:$0xff]
    %v198 = vld [vmem:[#allocation9 + $0x108] sm:$0xff]
    %v199 = vld [vmem:[#allocation9 + $0x110] sm:$0xff]
    %v200 = vld [vmem:[#allocation9 + $0x118] sm:$0xff]
    %v201 = vld [vmem:[#allocation9 + $0x120] sm:$0xff]
    %v202 = vld [vmem:[#allocation9 + $0x128] sm:$0xff]
    %v203 = vld [vmem:[#allocation9 + $0x130] sm:$0xff]
    %v204 = vld [vmem:[#allocation9 + $0x138] sm:$0xff]
    %v205 = vld [vmem:[#allocation9 + $0x140] sm:$0xff]
    %v206 = vld [vmem:[#allocation9 + $0x148] sm:$0xff]
    %v207 = vld [vmem:[#allocation9 + $0x150] sm:$0xff]
    %v208 = vld [vmem:[#allocation9 + $0x158] sm:$0xff]
    %v209 = vld [vmem:[#allocation9 + $0x160] sm:$0xff]
    %v210 = vld [vmem:[#allocation9 + $0x168] sm:$0xff]
    %v211 = vld [vmem:[#allocation9 + $0x170] sm:$0xff]
    %v212 = vld [vmem:[#allocation9 + $0x178] sm:$0xff]
    %v213 = vld [vmem:[#allocation9 + $0x180] sm:$0xff]
    %v214 = vld [vmem:[#allocation9 + $0x188] sm:$0xff]
    %v215 = vld [vmem:[#allocation9 + $0x190] sm:$0xff]
    %v216 = vld [vmem:[#allocation9 + $0x198] sm:$0xff]
    %v217 = vld [vmem:[#allocation9 + $0x1a0] sm:$0xff]
    %v218 = vld [vmem:[#allocation9 + $0x1a8] sm:$0xff]
    %v219 = vld [vmem:[#allocation9 + $0x1b0] sm:$0xff]
    %v220 = vld [vmem:[#allocation9 + $0x1b8] sm:$0xff]
    %v221 = vld [vmem:[#allocation9 + $0x1c0] sm:$0xff]
    %v222 = vld [vmem:[#allocation9 + $0x1c8] sm:$0xff]
    %v223 = vld [vmem:[#allocation9 + $0x1d0] sm:$0xff]
    %v224 = vld [vmem:[#allocation9 + $0x1d8] sm:$0xff]
    %v225 = vld [vmem:[#allocation9 + $0x1e0] sm:$0xff]
    %v226 = vld [vmem:[#allocation9 + $0x1e8] sm:$0xff]
    %v227 = vld [vmem:[#allocation9 + $0x1f0] sm:$0xff]
    %v228 = vld [vmem:[#allocation9 + $0x1f8] sm:$0xff]
    %v229 = vld [vmem:[#allocation11] sm:$0xf]
    %v230 = vld [vmem:[#allocation11 + $0x4] sm:$0xf]
    %v231 = vld [vmem:[#allocation11 + $0x8] sm:$0xf]
    %v232 = vld [vmem:[#allocation11 + $0xc] sm:$0xf]
    %v233 = vld [vmem:[#allocation11 + $0x10] sm:$0xf]
    %v234 = vld [vmem:[#allocation11 + $0x14] sm:$0xf]
    %v235 = vld [vmem:[#allocation11 + $0x18] sm:$0xf]
    %v236 = vld [vmem:[#allocation11 + $0x1c] sm:$0xf]
    %v237 = vld [vmem:[#allocation11 + $0x20] sm:$0xf]
    %v238 = vld [vmem:[#allocation11 + $0x24] sm:$0xf]
    %v239 = vld [vmem:[#allocation11 + $0x28] sm:$0xf]
    %v240 = vld [vmem:[#allocation11 + $0x2c] sm:$0xf]
    %v241 = vld [vmem:[#allocation11 + $0x30] sm:$0xf]
    %v242 = vld [vmem:[#allocation11 + $0x34] sm:$0xf]
    %v243 = vld [vmem:[#allocation11 + $0x38] sm:$0xf]
    %v244 = vld [vmem:[#allocation11 + $0x3c] sm:$0xf]
    %v245 = vld [vmem:[%s4] sm:$0xf]
    %v246 = vld [vmem:[%s7] sm:$0x1]
    %v248 = vlaneseq
    %v249 = vshrl.u32 %v248, 7
    %v250 = vsub.s32 0, %v249
    %v251 = vrot.slane %v245, %v250
    %v252 = vlaneseq
    %v253 = vshrl.u32 %v252, 7
    %v254 = vsub.s32 1, %v253
    %v255 = vrot.slane %v245, %v254
    %v256 = vlaneseq
    %v257 = vshrl.u32 %v256, 7
    %v258 = vsub.s32 2, %v257
    %v259 = vrot.slane %v245, %v258
    %v260 = vlaneseq
    %v261 = vshrl.u32 %v260, 7
    %v262 = vsub.s32 3, %v261
    %v263 = vrot.slane %v245, %v262
    %v270 = vunpack.c.l.b16 %v99
    %v271 = vunpack.c.l.b16 %v100
    %v272 = vpack.c.b16 %v271, %v270
    %v306 = vunpack.c.l.b16 %v101
    %v307 = vunpack.c.h.b16 %v101
    %v308 = vunpack.c.l.b16 %v102
    %v309 = vunpack.c.h.b16 %v102
    %v310 = vunpack.c.l.b16 %v103
    %v311 = vunpack.c.h.b16 %v103
    %v312 = vunpack.c.l.b16 %v104
    %v313 = vunpack.c.h.b16 %v104
    %v314 = vunpack.c.l.b16 %v105
    %v315 = vunpack.c.h.b16 %v105
    %v316 = vunpack.c.l.b16 %v106
    %v317 = vunpack.c.h.b16 %v106
    %v318 = vunpack.c.l.b16 %v107
    %v319 = vunpack.c.h.b16 %v107
    %v320 = vunpack.c.l.b16 %v108
    %v321 = vunpack.c.h.b16 %v108
    %v322 = vunpack.c.l.b16 %v109
    %v323 = vunpack.c.h.b16 %v109
    %v324 = vunpack.c.l.b16 %v110
    %v325 = vunpack.c.h.b16 %v110
    %v326 = vunpack.c.l.b16 %v111
    %v327 = vunpack.c.h.b16 %v111
    %v328 = vunpack.c.l.b16 %v112
    %v329 = vunpack.c.h.b16 %v112
    %v330 = vunpack.c.l.b16 %v113
    %v331 = vunpack.c.h.b16 %v113
    %v332 = vunpack.c.l.b16 %v114
    %v333 = vunpack.c.h.b16 %v114
    %v334 = vunpack.c.l.b16 %v115
    %v335 = vunpack.c.h.b16 %v115
    %v336 = vunpack.c.l.b16 %v116
    %v337 = vunpack.c.h.b16 %v116
    %v338 = vunpack.c.l.b16 %v117
    %v339 = vunpack.c.h.b16 %v117
    %v340 = vunpack.c.l.b16 %v118
    %v341 = vunpack.c.h.b16 %v118
    %v342 = vunpack.c.l.b16 %v119
    %v343 = vunpack.c.h.b16 %v119
    %v344 = vunpack.c.l.b16 %v120
    %v345 = vunpack.c.h.b16 %v120
    %v346 = vunpack.c.l.b16 %v121
    %v347 = vunpack.c.h.b16 %v121
    %v348 = vunpack.c.l.b16 %v122
    %v349 = vunpack.c.h.b16 %v122
    %v350 = vunpack.c.l.b16 %v123
    %v351 = vunpack.c.h.b16 %v123
    %v352 = vunpack.c.l.b16 %v124
    %v353 = vunpack.c.h.b16 %v124
    %v354 = vunpack.c.l.b16 %v125
    %v355 = vunpack.c.h.b16 %v125
    %v356 = vunpack.c.l.b16 %v126
    %v357 = vunpack.c.h.b16 %v126
    %v358 = vunpack.c.l.b16 %v127
    %v359 = vunpack.c.h.b16 %v127
    %v360 = vunpack.c.l.b16 %v128
    %v361 = vunpack.c.h.b16 %v128
    %v362 = vunpack.c.l.b16 %v129
    %v363 = vunpack.c.h.b16 %v129
    %v364 = vunpack.c.l.b16 %v130
    %v365 = vunpack.c.h.b16 %v130
    %v366 = vunpack.c.l.b16 %v131
    %v367 = vunpack.c.h.b16 %v131
    %v368 = vunpack.c.l.b16 %v132
    %v369 = vunpack.c.h.b16 %v132
    %v370 = vpack.c.b16 %v310, %v306
    %v371 = vpack.c.b16 %v311, %v307
    %v372 = vpack.c.b16 %v312, %v308
    %v373 = vpack.c.b16 %v313, %v309
    %v374 = vpack.c.b16 %v318, %v314
    %v375 = vpack.c.b16 %v319, %v315
    %v376 = vpack.c.b16 %v320, %v316
    %v377 = vpack.c.b16 %v321, %v317
    %v378 = vpack.c.b16 %v326, %v322
    %v379 = vpack.c.b16 %v327, %v323
    %v380 = vpack.c.b16 %v328, %v324
    %v381 = vpack.c.b16 %v329, %v325
    %v382 = vpack.c.b16 %v334, %v330
    %v383 = vpack.c.b16 %v335, %v331
    %v384 = vpack.c.b16 %v336, %v332
    %v385 = vpack.c.b16 %v337, %v333
    %v386 = vpack.c.b16 %v342, %v338
    %v387 = vpack.c.b16 %v343, %v339
    %v388 = vpack.c.b16 %v344, %v340
    %v389 = vpack.c.b16 %v345, %v341
    %v390 = vpack.c.b16 %v350, %v346
    %v391 = vpack.c.b16 %v351, %v347
    %v392 = vpack.c.b16 %v352, %v348
    %v393 = vpack.c.b16 %v353, %v349
    %v394 = vpack.c.b16 %v358, %v354
    %v395 = vpack.c.b16 %v359, %v355
    %v396 = vpack.c.b16 %v360, %v356
    %v397 = vpack.c.b16 %v361, %v357
    %v398 = vpack.c.b16 %v366, %v362
    %v399 = vpack.c.b16 %v367, %v363
    %v400 = vpack.c.b16 %v368, %v364
    %v401 = vpack.c.b16 %v369, %v365
    %434 = vmatprep.subr.bf16.mxu0 %v371
    %435 = vmatpush1.bf16.msra.mxu0 %v370
    %436 = vmatprep.subr.bf16.mxu0 %v375
    %437 = vmatpush1.bf16.msra.mxu0 %v374
    %438 = vmatprep.subr.bf16.mxu0 %v379
    %439 = vmatpush1.bf16.msra.mxu0 %v378
    %440 = vmatprep.subr.bf16.mxu0 %v383
    %441 = vmatpush1.bf16.msra.mxu0 %v382
    %442 = vmatprep.subr.bf16.mxu0 %v387
    %443 = vmatpush1.bf16.msra.mxu0 %v386
    %444 = vmatprep.subr.bf16.mxu0 %v391
    %445 = vmatpush1.bf16.msra.mxu0 %v390
    %446 = vmatprep.subr.bf16.mxu0 %v395
    %447 = vmatpush1.bf16.msra.mxu0 %v394
    %448 = vmatprep.subr.bf16.mxu0 %v399
    %449 = vmatpush1.bf16.msra.mxu0 %v398
    %450 = vmatprep.subr.bf16.mxu0 0
    %451 = vmatpush1.bf16.msra.mxu0 0
    %452 = vmatprep.subr.bf16.mxu0 0
    %453 = vmatpush1.bf16.msra.mxu0 0
    %454 = vmatprep.subr.bf16.mxu0 0
    %455 = vmatpush1.bf16.msra.mxu0 0
    %456 = vmatprep.subr.bf16.mxu0 0
    %457 = vmatpush1.bf16.msra.mxu0 0
    %458 = vmatprep.subr.bf16.mxu0 0
    %459 = vmatpush1.bf16.msra.mxu0 0
    %460 = vmatprep.subr.bf16.mxu0 0
    %461 = vmatpush1.bf16.msra.mxu0 0
    %462 = vmatprep.subr.bf16.mxu0 0
    %463 = vmatpush1.bf16.msra.mxu0 0
    %464 = vmatprep.subr.bf16.mxu0 0
    %465 = vmatpush1.bf16.msra.mxu0 0
    %466 = vmatprep.mubr.bf16.mxu0 0
    %467 = vmatmul.mubr.bf16.gmra.mrb[0].mxu0 %v272
    %v468 = vpop.f32.mrb[0].mxu0
    %v469 = vadd.f32 %v251, %v468
    %v470 = vpop.f32.mrb[0].mxu0
    %v471 = vadd.f32 %v255, %v470
    %v472 = vpop.f32.mrb[0].mxu0
    %v473 = vadd.f32 %v251, %v472
    %v474 = vpop.f32.mrb[0].mxu0
    %v475 = vadd.f32 %v255, %v474
    %476 = vdwg.mxu0
    %477 = vmatprep.subr.bf16.mxu0 %v373
    %478 = vmatpush1.bf16.msra.mxu0 %v372
    %479 = vmatprep.subr.bf16.mxu0 %v377
    %480 = vmatpush1.bf16.msra.mxu0 %v376
    %481 = vmatprep.subr.bf16.mxu0 %v381
    %482 = vmatpush1.bf16.msra.mxu0 %v380
    %483 = vmatprep.subr.bf16.mxu0 %v385
    %484 = vmatpush1.bf16.msra.mxu0 %v384
    %485 = vmatprep.subr.bf16.mxu0 %v389
    %486 = vmatpush1.bf16.msra.mxu0 %v388
    %487 = vmatprep.subr.bf16.mxu0 %v393
    %488 = vmatpush1.bf16.msra.mxu0 %v392
    %489 = vmatprep.subr.bf16.mxu0 %v397
    %490 = vmatpush1.bf16.msra.mxu0 %v396
    %491 = vmatprep.subr.bf16.mxu0 %v401
    %492 = vmatpush1.bf16.msra.mxu0 %v400
    %493 = vmatprep.subr.bf16.mxu0 0
    %494 = vmatpush1.bf16.msra.mxu0 0
    %495 = vmatprep.subr.bf16.mxu0 0
    %496 = vmatpush1.bf16.msra.mxu0 0
    %497 = vmatprep.subr.bf16.mxu0 0
    %498 = vmatpush1.bf16.msra.mxu0 0
    %499 = vmatprep.subr.bf16.mxu0 0
    %500 = vmatpush1.bf16.msra.mxu0 0
    %501 = vmatprep.subr.bf16.mxu0 0
    %502 = vmatpush1.bf16.msra.mxu0 0
    %503 = vmatprep.subr.bf16.mxu0 0
    %504 = vmatpush1.bf16.msra.mxu0 0
    %505 = vmatprep.subr.bf16.mxu0 0
    %506 = vmatpush1.bf16.msra.mxu0 0
    %507 = vmatprep.subr.bf16.mxu0 0
    %508 = vmatpush1.bf16.msra.mxu0 0
    %509 = vmatprep.mubr.bf16.mxu0 0
    %510 = vmatmul.mubr.bf16.gmra.mrb[0].mxu0 %v272
    %v511 = vpop.f32.mrb[0].mxu0
    %v512 = vadd.f32 %v259, %v511
    %v513 = vpop.f32.mrb[0].mxu0
    %v514 = vadd.f32 %v263, %v513
    %v515 = vpop.f32.mrb[0].mxu0
    %v516 = vadd.f32 %v259, %v515
    %v517 = vpop.f32.mrb[0].mxu0
    %v518 = vadd.f32 %v263, %v517
    %519 = vdwg.mxu0
    %v520 = vld [vmem:[%s5] sm:$0xf]
    %v522 = vlaneseq
    %v523 = vshrl.u32 %v522, 7
    %v524 = vsub.s32 0, %v523
    %v525 = vrot.slane %v520, %v524
    %v526 = vlaneseq
    %v527 = vshrl.u32 %v526, 7
    %v528 = vsub.s32 1, %v527
    %v529 = vrot.slane %v520, %v528
    %v530 = vlaneseq
    %v531 = vshrl.u32 %v530, 7
    %v532 = vsub.s32 2, %v531
    %v533 = vrot.slane %v520, %v532
    %v534 = vlaneseq
    %v535 = vshrl.u32 %v534, 7
    %v536 = vsub.s32 3, %v535
    %v537 = vrot.slane %v520, %v536
    %542 = vst [vmem:[#allocation2] sm:$0xff] 0
    %543 = vst [vmem:[#allocation2 + $0x8] sm:$0xff] 0
    %v544 = vmul.f32 %v469, 0.5
    %v545 = vmul.f32 %v473, 0.5
    %v546 = vtanh.pop %v544
    %v547 = vtanh.pop %v545
    %v548 = vmul.f32 %v546, 0.5
    %v549 = vmul.f32 %v547, 0.5
    %v550 = vadd.f32 %v548, 0.5
    %v551 = vadd.f32 %v549, 0.5
    %v552 = vmul.f32 %v471, 0.5
    %v553 = vmul.f32 %v475, 0.5
    %v554 = vtanh.pop %v552
    %v555 = vtanh.pop %v553
    %v556 = vmul.f32 %v554, 0.5
    %v557 = vmul.f32 %v555, 0.5
    %v558 = vadd.f32 %v556, 0.5
    %v559 = vadd.f32 %v557, 0.5
    %v560 = vtanh.pop %v512
    %v561 = vtanh.pop %v516
    %v562 = vmul.f32 %v514, 0.5
    %v563 = vmul.f32 %v518, 0.5
    %v564 = vtanh.pop %v562
    %v565 = vtanh.pop %v563
    %v566 = vmul.f32 %v564, 0.5
    %v567 = vmul.f32 %v565, 0.5
    %v568 = vadd.f32 %v566, 0.5
    %v569 = vadd.f32 %v567, 0.5
    %v570 = vmul.f32 %v558, 0.0
    %v571 = vmul.f32 %v559, 0.0
    %v572 = vmul.f32 %v550, %v560
    %v573 = vmul.f32 %v551, %v561
    %v574 = vadd.f32 %v570, %v572
    %v575 = vadd.f32 %v571, %v573
    %v576 = vtanh.pop %v574
    %v577 = vtanh.pop %v575
    %v578 = vmul.f32 %v568, %v576
    %v579 = vmul.f32 %v569, %v577
    %v580 = vpack.c.bf16 %v579, %v578
    %581 = vst [vmem:[#allocation2] sm:$0xff] %v580
    %v582 = vld [vmem:[#allocation2] sm:$0xff]
    %v583 = vld [vmem:[#allocation2 + $0x8] sm:$0xff]
    %v648 = vunpack.c.l.b16 %v165
    %v649 = vunpack.c.h.b16 %v165
    %v650 = vunpack.c.l.b16 %v166
    %v651 = vunpack.c.h.b16 %v166
    %v652 = vunpack.c.l.b16 %v167
    %v653 = vunpack.c.h.b16 %v167
    %v654 = vunpack.c.l.b16 %v168
    %v655 = vunpack.c.h.b16 %v168
    %v656 = vunpack.c.l.b16 %v169
    %v657 = vunpack.c.h.b16 %v169
    %v658 = vunpack.c.l.b16 %v170
    %v659 = vunpack.c.h.b16 %v170
    %v660 = vunpack.c.l.b16 %v171
    %v661 = vunpack.c.h.b16 %v171
    %v662 = vunpack.c.l.b16 %v172
    %v663 = vunpack.c.h.b16 %v172
    %v664 = vunpack.c.l.b16 %v173
    %v665 = vunpack.c.h.b16 %v173
    %v666 = vunpack.c.l.b16 %v174
    %v667 = vunpack.c.h.b16 %v174
    %v668 = vunpack.c.l.b16 %v175
    %v669 = vunpack.c.h.b16 %v175
    %v670 = vunpack.c.l.b16 %v176
    %v671 = vunpack.c.h.b16 %v176
    %v672 = vunpack.c.l.b16 %v177
    %v673 = vunpack.c.h.b16 %v177
    %v674 = vunpack.c.l.b16 %v178
    %v675 = vunpack.c.h.b16 %v178
    %v676 = vunpack.c.l.b16 %v179
    %v677 = vunpack.c.h.b16 %v179
    %v678 = vunpack.c.l.b16 %v180
    %v679 = vunpack.c.h.b16 %v180
    %v680 = vunpack.c.l.b16 %v181
    %v681 = vunpack.c.h.b16 %v181
    %v682 = vunpack.c.l.b16 %v182
    %v683 = vunpack.c.h.b16 %v182
    %v684 = vunpack.c.l.b16 %v183
    %v685 = vunpack.c.h.b16 %v183
    %v686 = vunpack.c.l.b16 %v184
    %v687 = vunpack.c.h.b16 %v184
    %v688 = vunpack.c.l.b16 %v185
    %v689 = vunpack.c.h.b16 %v185
    %v690 = vunpack.c.l.b16 %v186
    %v691 = vunpack.c.h.b16 %v186
    %v692 = vunpack.c.l.b16 %v187
    %v693 = vunpack.c.h.b16 %v187
    %v694 = vunpack.c.l.b16 %v188
    %v695 = vunpack.c.h.b16 %v188
    %v696 = vunpack.c.l.b16 %v189
    %v697 = vunpack.c.h.b16 %v189
    %v698 = vunpack.c.l.b16 %v190
    %v699 = vunpack.c.h.b16 %v190
    %v700 = vunpack.c.l.b16 %v191
    %v701 = vunpack.c.h.b16 %v191
    %v702 = vunpack.c.l.b16 %v192
    %v703 = vunpack.c.h.b16 %v192
    %v704 = vunpack.c.l.b16 %v193
    %v705 = vunpack.c.h.b16 %v193
    %v706 = vunpack.c.l.b16 %v194
    %v707 = vunpack.c.h.b16 %v194
    %v708 = vunpack.c.l.b16 %v195
    %v709 = vunpack.c.h.b16 %v195
    %v710 = vunpack.c.l.b16 %v196
    %v711 = vunpack.c.h.b16 %v196
    %v712 = vunpack.c.l.b16 %v197
    %v713 = vunpack.c.h.b16 %v197
    %v714 = vunpack.c.l.b16 %v198
    %v715 = vunpack.c.h.b16 %v198
    %v716 = vunpack.c.l.b16 %v199
    %v717 = vunpack.c.h.b16 %v199
    %v718 = vunpack.c.l.b16 %v200
    %v719 = vunpack.c.h.b16 %v200
    %v720 = vunpack.c.l.b16 %v201
    %v721 = vunpack.c.h.b16 %v201
    %v722 = vunpack.c.l.b16 %v202
    %v723 = vunpack.c.h.b16 %v202
    %v724 = vunpack.c.l.b16 %v203
    %v725 = vunpack.c.h.b16 %v203
    %v726 = vunpack.c.l.b16 %v204
    %v727 = vunpack.c.h.b16 %v204
    %v728 = vunpack.c.l.b16 %v205
    %v729 = vunpack.c.h.b16 %v205
    %v730 = vunpack.c.l.b16 %v206
    %v731 = vunpack.c.h.b16 %v206
    %v732 = vunpack.c.l.b16 %v207
    %v733 = vunpack.c.h.b16 %v207
    %v734 = vunpack.c.l.b16 %v208
    %v735 = vunpack.c.h.b16 %v208
    %v736 = vunpack.c.l.b16 %v209
    %v737 = vunpack.c.h.b16 %v209
    %v738 = vunpack.c.l.b16 %v210
    %v739 = vunpack.c.h.b16 %v210
    %v740 = vunpack.c.l.b16 %v211
    %v741 = vunpack.c.h.b16 %v211
    %v742 = vunpack.c.l.b16 %v212
    %v743 = vunpack.c.h.b16 %v212
    %v744 = vunpack.c.l.b16 %v213
    %v745 = vunpack.c.h.b16 %v213
    %v746 = vunpack.c.l.b16 %v214
    %v747 = vunpack.c.h.b16 %v214
    %v748 = vunpack.c.l.b16 %v215
    %v749 = vunpack.c.h.b16 %v215
    %v750 = vunpack.c.l.b16 %v216
    %v751 = vunpack.c.h.b16 %v216
    %v752 = vunpack.c.l.b16 %v217
    %v753 = vunpack.c.h.b16 %v217
    %v754 = vunpack.c.l.b16 %v218
    %v755 = vunpack.c.h.b16 %v218
    %v756 = vunpack.c.l.b16 %v219
    %v757 = vunpack.c.h.b16 %v219
    %v758 = vunpack.c.l.b16 %v220
    %v759 = vunpack.c.h.b16 %v220
    %v760 = vunpack.c.l.b16 %v221
    %v761 = vunpack.c.h.b16 %v221
    %v762 = vunpack.c.l.b16 %v222
    %v763 = vunpack.c.h.b16 %v222
    %v764 = vunpack.c.l.b16 %v223
    %v765 = vunpack.c.h.b16 %v223
    %v766 = vunpack.c.l.b16 %v224
    %v767 = vunpack.c.h.b16 %v224
    %v768 = vunpack.c.l.b16 %v225
    %v769 = vunpack.c.h.b16 %v225
    %v770 = vunpack.c.l.b16 %v226
    %v771 = vunpack.c.h.b16 %v226
    %v772 = vunpack.c.l.b16 %v227
    %v773 = vunpack.c.h.b16 %v227
    %v774 = vunpack.c.l.b16 %v228
    %v775 = vunpack.c.h.b16 %v228
    %v776 = vpack.c.b16 %v652, %v648
    %v777 = vpack.c.b16 %v653, %v649
    %v778 = vpack.c.b16 %v654, %v650
    %v779 = vpack.c.b16 %v655, %v651
    %v780 = vpack.c.b16 %v660, %v656
    %v781 = vpack.c.b16 %v661, %v657
    %v782 = vpack.c.b16 %v662, %v658
    %v783 = vpack.c.b16 %v663, %v659
    %v784 = vpack.c.b16 %v668, %v664
    %v785 = vpack.c.b16 %v669, %v665
    %v786 = vpack.c.b16 %v670, %v666
    %v787 = vpack.c.b16 %v671, %v667
    %v788 = vpack.c.b16 %v676, %v672
    %v789 = vpack.c.b16 %v677, %v673
    %v790 = vpack.c.b16 %v678, %v674
    %v791 = vpack.c.b16 %v679, %v675
    %v792 = vpack.c.b16 %v684, %v680
    %v793 = vpack.c.b16 %v685, %v681
    %v794 = vpack.c.b16 %v686, %v682
    %v795 = vpack.c.b16 %v687, %v683
    %v796 = vpack.c.b16 %v692, %v688
    %v797 = vpack.c.b16 %v693, %v689
    %v798 = vpack.c.b16 %v694, %v690
    %v799 = vpack.c.b16 %v695, %v691
    %v800 = vpack.c.b16 %v700, %v696
    %v801 = vpack.c.b16 %v701, %v697
    %v802 = vpack.c.b16 %v702, %v698
    %v803 = vpack.c.b16 %v703, %v699
    %v804 = vpack.c.b16 %v708, %v704
    %v805 = vpack.c.b16 %v709, %v705
    %v806 = vpack.c.b16 %v710, %v706
    %v807 = vpack.c.b16 %v711, %v707
    %v808 = vpack.c.b16 %v716, %v712
    %v809 = vpack.c.b16 %v717, %v713
    %v810 = vpack.c.b16 %v718, %v714
    %v811 = vpack.c.b16 %v719, %v715
    %v812 = vpack.c.b16 %v724, %v720
    %v813 = vpack.c.b16 %v725, %v721
    %v814 = vpack.c.b16 %v726, %v722
    %v815 = vpack.c.b16 %v727, %v723
    %v816 = vpack.c.b16 %v732, %v728
    %v817 = vpack.c.b16 %v733, %v729
    %v818 = vpack.c.b16 %v734, %v730
    %v819 = vpack.c.b16 %v735, %v731
    %v820 = vpack.c.b16 %v740, %v736
    %v821 = vpack.c.b16 %v741, %v737
    %v822 = vpack.c.b16 %v742, %v738
    %v823 = vpack.c.b16 %v743, %v739
    %v824 = vpack.c.b16 %v748, %v744
    %v825 = vpack.c.b16 %v749, %v745
    %v826 = vpack.c.b16 %v750, %v746
    %v827 = vpack.c.b16 %v751, %v747
    %v828 = vpack.c.b16 %v756, %v752
    %v829 = vpack.c.b16 %v757, %v753
    %v830 = vpack.c.b16 %v758, %v754
    %v831 = vpack.c.b16 %v759, %v755
    %v832 = vpack.c.b16 %v764, %v760
    %v833 = vpack.c.b16 %v765, %v761
    %v834 = vpack.c.b16 %v766, %v762
    %v835 = vpack.c.b16 %v767, %v763
    %v836 = vpack.c.b16 %v772, %v768
    %v837 = vpack.c.b16 %v773, %v769
    %v838 = vpack.c.b16 %v774, %v770
    %v839 = vpack.c.b16 %v775, %v771
    %904 = vmatprep.subr.bf16.mxu0 %v777
    %905 = vmatpush1.bf16.msra.mxu0 %v776
    %906 = vmatprep.subr.bf16.mxu0 %v781
    %907 = vmatpush1.bf16.msra.mxu0 %v780
    %908 = vmatprep.subr.bf16.mxu0 %v785
    %909 = vmatpush1.bf16.msra.mxu0 %v784
    %910 = vmatprep.subr.bf16.mxu0 %v789
    %911 = vmatpush1.bf16.msra.mxu0 %v788
    %912 = vmatprep.subr.bf16.mxu0 %v793
    %913 = vmatpush1.bf16.msra.mxu0 %v792
    %914 = vmatprep.subr.bf16.mxu0 %v797
    %915 = vmatpush1.bf16.msra.mxu0 %v796
    %916 = vmatprep.subr.bf16.mxu0 %v801
    %917 = vmatpush1.bf16.msra.mxu0 %v800
    %918 = vmatprep.subr.bf16.mxu0 %v805
    %919 = vmatpush1.bf16.msra.mxu0 %v804
    %920 = vmatprep.subr.bf16.mxu0 %v809
    %921 = vmatpush1.bf16.msra.mxu0 %v808
    %922 = vmatprep.subr.bf16.mxu0 %v813
    %923 = vmatpush1.bf16.msra.mxu0 %v812
    %924 = vmatprep.subr.bf16.mxu0 %v817
    %925 = vmatpush1.bf16.msra.mxu0 %v816
    %926 = vmatprep.subr.bf16.mxu0 %v821
    %927 = vmatpush1.bf16.msra.mxu0 %v820
    %928 = vmatprep.subr.bf16.mxu0 %v825
    %929 = vmatpush1.bf16.msra.mxu0 %v824
    %930 = vmatprep.subr.bf16.mxu0 %v829
    %931 = vmatpush1.bf16.msra.mxu0 %v828
    %932 = vmatprep.subr.bf16.mxu0 %v833
    %933 = vmatpush1.bf16.msra.mxu0 %v832
    %934 = vmatprep.subr.bf16.mxu0 %v837
    %935 = vmatpush1.bf16.msra.mxu0 %v836
    %936 = vmatprep.mubr.bf16.mxu0 %v583
    %937 = vmatmul.mubr.bf16.gmra.mrb[0].mxu0 %v582
    %v938 = vpop.f32.mrb[0].mxu0
    %v939 = vadd.f32 %v525, %v938
    %v940 = vpop.f32.mrb[0].mxu0
    %v941 = vadd.f32 %v529, %v940
    %v942 = vpop.f32.mrb[0].mxu0
    %v943 = vadd.f32 %v525, %v942
    %v944 = vpop.f32.mrb[0].mxu0
    %v945 = vadd.f32 %v529, %v944
    %946 = vdwg.mxu0
    %947 = vmatprep.subr.bf16.mxu0 %v779
    %948 = vmatpush1.bf16.msra.mxu0 %v778
    %949 = vmatprep.subr.bf16.mxu0 %v783
    %950 = vmatpush1.bf16.msra.mxu0 %v782
    %951 = vmatprep.subr.bf16.mxu0 %v787
    %952 = vmatpush1.bf16.msra.mxu0 %v786
    %953 = vmatprep.subr.bf16.mxu0 %v791
    %954 = vmatpush1.bf16.msra.mxu0 %v790
    %955 = vmatprep.subr.bf16.mxu0 %v795
    %956 = vmatpush1.bf16.msra.mxu0 %v794
    %957 = vmatprep.subr.bf16.mxu0 %v799
    %958 = vmatpush1.bf16.msra.mxu0 %v798
    %959 = vmatprep.subr.bf16.mxu0 %v803
    %960 = vmatpush1.bf16.msra.mxu0 %v802
    %961 = vmatprep.subr.bf16.mxu0 %v807
    %962 = vmatpush1.bf16.msra.mxu0 %v806
    %963 = vmatprep.subr.bf16.mxu0 %v811
    %964 = vmatpush1.bf16.msra.mxu0 %v810
    %965 = vmatprep.subr.bf16.mxu0 %v815
    %966 = vmatpush1.bf16.msra.mxu0 %v814
    %967 = vmatprep.subr.bf16.mxu0 %v819
    %968 = vmatpush1.bf16.msra.mxu0 %v818
    %969 = vmatprep.subr.bf16.mxu0 %v823
    %970 = vmatpush1.bf16.msra.mxu0 %v822
    %971 = vmatprep.subr.bf16.mxu0 %v827
    %972 = vmatpush1.bf16.msra.mxu0 %v826
    %973 = vmatprep.subr.bf16.mxu0 %v831
    %974 = vmatpush1.bf16.msra.mxu0 %v830
    %975 = vmatprep.subr.bf16.mxu0 %v835
    %976 = vmatpush1.bf16.msra.mxu0 %v834
    %977 = vmatprep.subr.bf16.mxu0 %v839
    %978 = vmatpush1.bf16.msra.mxu0 %v838
    %979 = vmatprep.mubr.bf16.mxu0 %v583
    %980 = vmatmul.mubr.bf16.gmra.mrb[0].mxu0 %v582
    %v981 = vpop.f32.mrb[0].mxu0
    %v982 = vadd.f32 %v533, %v981
    %v983 = vpop.f32.mrb[0].mxu0
    %v984 = vadd.f32 %v537, %v983
    %v985 = vpop.f32.mrb[0].mxu0
    %v986 = vadd.f32 %v533, %v985
    %v987 = vpop.f32.mrb[0].mxu0
    %v988 = vadd.f32 %v537, %v987
    %989 = vdwg.mxu0
    %v990 = vmul.f32 %v939, 0.5
    %v991 = vmul.f32 %v943, 0.5
    %v992 = vtanh.pop %v990
    %v993 = vtanh.pop %v991
    %v994 = vmul.f32 %v992, 0.5
    %v995 = vmul.f32 %v993, 0.5
    %v996 = vadd.f32 %v994, 0.5
    %v997 = vadd.f32 %v995, 0.5
    %v998 = vmul.f32 %v941, 0.5
    %v999 = vmul.f32 %v945, 0.5
    %v1000 = vtanh.pop %v998
    %v1001 = vtanh.pop %v999
    %v1002 = vmul.f32 %v1000, 0.5
    %v1003 = vmul.f32 %v1001, 0.5
    %v1004 = vadd.f32 %v1002, 0.5
    %v1005 = vadd.f32 %v1003, 0.5
    %v1006 = vtanh.pop %v982
    %v1007 = vtanh.pop %v986
    %v1008 = vmul.f32 %v984, 0.5
    %v1009 = vmul.f32 %v988, 0.5
    %v1010 = vtanh.pop %v1008
    %v1011 = vtanh.pop %v1009
    %v1012 = vmul.f32 %v1010, 0.5
    %v1013 = vmul.f32 %v1011, 0.5
    %v1014 = vadd.f32 %v1012, 0.5
    %v1015 = vadd.f32 %v1013, 0.5
    %v1016 = vmul.f32 %v1004, 0.0
    %v1017 = vmul.f32 %v1005, 0.0
    %v1018 = vmul.f32 %v996, %v1006
    %v1019 = vmul.f32 %v997, %v1007
    %v1020 = vadd.f32 %v1016, %v1018
    %v1021 = vadd.f32 %v1017, %v1019
    %v1022 = vtanh.pop %v1020
    %v1023 = vtanh.pop %v1021
    %v1024 = vmul.f32 %v1014, %v1022
    %v1025 = vmul.f32 %v1015, %v1023
    %v1026 = vpack.c.bf16 %v1025, %v1024
    %1027 = vst [vmem:[#allocation2 + $0x8] sm:$0xff] %v1026
    %v1029 = vlaneseq
    %v1030 = vshrl.u32 %v1029, 7
    %v1031 = vsub.s32 0, %v1030
    %v1032 = vrot.slane %v246, %v1031
    %v1050 = vunpack.c.l.b16 %v229
    %v1051 = vunpack.c.l.b16 %v230
    %v1052 = vunpack.c.l.b16 %v231
    %v1053 = vunpack.c.l.b16 %v232
    %v1054 = vunpack.c.l.b16 %v233
    %v1055 = vunpack.c.l.b16 %v234
    %v1056 = vunpack.c.l.b16 %v235
    %v1057 = vunpack.c.l.b16 %v236
    %v1058 = vunpack.c.l.b16 %v237
    %v1059 = vunpack.c.l.b16 %v238
    %v1060 = vunpack.c.l.b16 %v239
    %v1061 = vunpack.c.l.b16 %v240
    %v1062 = vunpack.c.l.b16 %v241
    %v1063 = vunpack.c.l.b16 %v242
    %v1064 = vunpack.c.l.b16 %v243
    %v1065 = vunpack.c.l.b16 %v244
    %v1066 = vpack.c.b16 %v1051, %v1050
    %v1067 = vpack.c.b16 %v1053, %v1052
    %v1068 = vpack.c.b16 %v1055, %v1054
    %v1069 = vpack.c.b16 %v1057, %v1056
    %v1070 = vpack.c.b16 %v1059, %v1058
    %v1071 = vpack.c.b16 %v1061, %v1060
    %v1072 = vpack.c.b16 %v1063, %v1062
    %v1073 = vpack.c.b16 %v1065, %v1064
    %1082 = vmatprep.subr.bf16.mxu0 0
    %1083 = vmatpush1.bf16.msra.mxu0 %v1066
    %1084 = vmatprep.subr.bf16.mxu0 0
    %1085 = vmatpush1.bf16.msra.mxu0 %v1067
    %1086 = vmatprep.subr.bf16.mxu0 0
    %1087 = vmatpush1.bf16.msra.mxu0 %v1068
    %1088 = vmatprep.subr.bf16.mxu0 0
    %1089 = vmatpush1.bf16.msra.mxu0 %v1069
    %1090 = vmatprep.subr.bf16.mxu0 0
    %1091 = vmatpush1.bf16.msra.mxu0 %v1070
    %1092 = vmatprep.subr.bf16.mxu0 0
    %1093 = vmatpush1.bf16.msra.mxu0 %v1071
    %1094 = vmatprep.subr.bf16.mxu0 0
    %1095 = vmatpush1.bf16.msra.mxu0 %v1072
    %1096 = vmatprep.subr.bf16.mxu0 0
    %1097 = vmatpush1.bf16.msra.mxu0 %v1073
    %1098 = vmatprep.subr.bf16.mxu0 0
    %1099 = vmatpush1.bf16.msra.mxu0 0
    %1100 = vmatprep.subr.bf16.mxu0 0
    %1101 = vmatpush1.bf16.msra.mxu0 0
    %1102 = vmatprep.subr.bf16.mxu0 0
    %1103 = vmatpush1.bf16.msra.mxu0 0
    %1104 = vmatprep.subr.bf16.mxu0 0
    %1105 = vmatpush1.bf16.msra.mxu0 0
    %1106 = vmatprep.subr.bf16.mxu0 0
    %1107 = vmatpush1.bf16.msra.mxu0 0
    %1108 = vmatprep.subr.bf16.mxu0 0
    %1109 = vmatpush1.bf16.msra.mxu0 0
    %1110 = vmatprep.subr.bf16.mxu0 0
    %1111 = vmatpush1.bf16.msra.mxu0 0
    %1112 = vmatprep.subr.bf16.mxu0 0
    %1113 = vmatpush1.bf16.msra.mxu0 0
    %1114 = vmatprep.mubr.bf16.mxu0 0
    %1115 = vmatmul.mubr.bf16.gmra.mrb[0].mxu0 %v1026
    %v1116 = vpop.f32.mrb[0].mxu0
    %v1117 = vadd.f32 %v1032, %v1116
    %v1118 = vpop.f32.mrb[0].mxu0
    %v1119 = vpop.f32.mrb[0].mxu0
    %v1120 = vadd.f32 %v1032, %v1119
    %v1121 = vpop.f32.mrb[0].mxu0
    %1122 = vdwg.mxu0
    %1123 = vmax.xlane.f32.xlu0 %v1117
    %v1124 = vpop.xlane.xlu0 %1123
    %1125 = vmax.xlane.f32.xlu0 %v1120
    %v1126 = vpop.xlane.xlu0 %1125
    %v1127 = vsub.f32 %v1117, %v1124
    %v1128 = vsub.f32 %v1120, %v1126
    %v1129 = vmul.f32 %v1127, 1.442695
    %v1130 = vpow.pop %v1129
    %v1131 = vmul.f32 %v1128, 1.442695
    %v1132 = vpow.pop %v1131
    %1133 = vadd.xlane.f32.xlu0 %v1130
    %v1134 = vpop.xlane.xlu0 %1133
    %1135 = vadd.xlane.f32.xlu0 %v1132
    %v1136 = vpop.xlane.xlu0 %1135
    %v1137 = vrcp.pop %v1134
    %v1138 = vrcp.pop %v1136
    %v1139 = vmul.f32 %v1130, %v1137
    %v1140 = vmul.f32 %v1132, %v1138
    %1141 = vst [vmem:[#allocation12] sm:$0xff] %v1139
    %1142 = vst [vmem:[#allocation12 + $0x20] sm:$0xff] %v1140
    %v1143 = vld [vmem:[#allocation2] sm:$0xff]
    %v1176 = vunpack.c.l.b16 %v133
    %v1177 = vunpack.c.h.b16 %v133
    %v1178 = vunpack.c.l.b16 %v134
    %v1179 = vunpack.c.h.b16 %v134
    %v1180 = vunpack.c.l.b16 %v135
    %v1181 = vunpack.c.h.b16 %v135
    %v1182 = vunpack.c.l.b16 %v136
    %v1183 = vunpack.c.h.b16 %v136
    %v1184 = vunpack.c.l.b16 %v137
    %v1185 = vunpack.c.h.b16 %v137
    %v1186 = vunpack.c.l.b16 %v138
    %v1187 = vunpack.c.h.b16 %v138
    %v1188 = vunpack.c.l.b16 %v139
    %v1189 = vunpack.c.h.b16 %v139
    %v1190 = vunpack.c.l.b16 %v140
    %v1191 = vunpack.c.h.b16 %v140
    %v1192 = vunpack.c.l.b16 %v141
    %v1193 = vunpack.c.h.b16 %v141
    %v1194 = vunpack.c.l.b16 %v142
    %v1195 = vunpack.c.h.b16 %v142
    %v1196 = vunpack.c.l.b16 %v143
    %v1197 = vunpack.c.h.b16 %v143
    %v1198 = vunpack.c.l.b16 %v144
    %v1199 = vunpack.c.h.b16 %v144
    %v1200 = vunpack.c.l.b16 %v145
    %v1201 = vunpack.c.h.b16 %v145
    %v1202 = vunpack.c.l.b16 %v146
    %v1203 = vunpack.c.h.b16 %v146
    %v1204 = vunpack.c.l.b16 %v147
    %v1205 = vunpack.c.h.b16 %v147
    %v1206 = vunpack.c.l.b16 %v148
    %v1207 = vunpack.c.h.b16 %v148
    %v1208 = vunpack.c.l.b16 %v149
    %v1209 = vunpack.c.h.b16 %v149
    %v1210 = vunpack.c.l.b16 %v150
    %v1211 = vunpack.c.h.b16 %v150
    %v1212 = vunpack.c.l.b16 %v151
    %v1213 = vunpack.c.h.b16 %v151
    %v1214 = vunpack.c.l.b16 %v152
    %v1215 = vunpack.c.h.b16 %v152
    %v1216 = vunpack.c.l.b16 %v153
    %v1217 = vunpack.c.h.b16 %v153
    %v1218 = vunpack.c.l.b16 %v154
    %v1219 = vunpack.c.h.b16 %v154
    %v1220 = vunpack.c.l.b16 %v155
    %v1221 = vunpack.c.h.b16 %v155
    %v1222 = vunpack.c.l.b16 %v156
    %v1223 = vunpack.c.h.b16 %v156
    %v1224 = vunpack.c.l.b16 %v157
    %v1225 = vunpack.c.h.b16 %v157
    %v1226 = vunpack.c.l.b16 %v158
    %v1227 = vunpack.c.h.b16 %v158
    %v1228 = vunpack.c.l.b16 %v159
    %v1229 = vunpack.c.h.b16 %v159
    %v1230 = vunpack.c.l.b16 %v160
    %v1231 = vunpack.c.h.b16 %v160
    %v1232 = vunpack.c.l.b16 %v161
    %v1233 = vunpack.c.h.b16 %v161
    %v1234 = vunpack.c.l.b16 %v162
    %v1235 = vunpack.c.h.b16 %v162
    %v1236 = vunpack.c.l.b16 %v163
    %v1237 = vunpack.c.h.b16 %v163
    %v1238 = vunpack.c.l.b16 %v164
    %v1239 = vunpack.c.h.b16 %v164
    %v1240 = vpack.c.b16 %v1180, %v1176
    %v1241 = vpack.c.b16 %v1181, %v1177
    %v1242 = vpack.c.b16 %v1182, %v1178
    %v1243 = vpack.c.b16 %v1183, %v1179
    %v1244 = vpack.c.b16 %v1188, %v1184
    %v1245 = vpack.c.b16 %v1189, %v1185
    %v1246 = vpack.c.b16 %v1190, %v1186
    %v1247 = vpack.c.b16 %v1191, %v1187
    %v1248 = vpack.c.b16 %v1196, %v1192
    %v1249 = vpack.c.b16 %v1197, %v1193
    %v1250 = vpack.c.b16 %v1198, %v1194
    %v1251 = vpack.c.b16 %v1199, %v1195
    %v1252 = vpack.c.b16 %v1204, %v1200
    %v1253 = vpack.c.b16 %v1205, %v1201
    %v1254 = vpack.c.b16 %v1206, %v1202
    %v1255 = vpack.c.b16 %v1207, %v1203
    %v1256 = vpack.c.b16 %v1212, %v1208
    %v1257 = vpack.c.b16 %v1213, %v1209
    %v1258 = vpack.c.b16 %v1214, %v1210
    %v1259 = vpack.c.b16 %v1215, %v1211
    %v1260 = vpack.c.b16 %v1220, %v1216
    %v1261 = vpack.c.b16 %v1221, %v1217
    %v1262 = vpack.c.b16 %v1222, %v1218
    %v1263 = vpack.c.b16 %v1223, %v1219
    %v1264 = vpack.c.b16 %v1228, %v1224
    %v1265 = vpack.c.b16 %v1229, %v1225
    %v1266 = vpack.c.b16 %v1230, %v1226
    %v1267 = vpack.c.b16 %v1231, %v1227
    %v1268 = vpack.c.b16 %v1236, %v1232
    %v1269 = vpack.c.b16 %v1237, %v1233
    %v1270 = vpack.c.b16 %v1238, %v1234
    %v1271 = vpack.c.b16 %v1239, %v1235
    %1304 = vmatprep.subr.bf16.mxu0 %v1241
    %1305 = vmatpush1.bf16.msra.mxu0 %v1240
    %1306 = vmatprep.subr.bf16.mxu0 %v1245
    %1307 = vmatpush1.bf16.msra.mxu0 %v1244
    %1308 = vmatprep.subr.bf16.mxu0 %v1249
    %1309 = vmatpush1.bf16.msra.mxu0 %v1248
    %1310 = vmatprep.subr.bf16.mxu0 %v1253
    %1311 = vmatpush1.bf16.msra.mxu0 %v1252
    %1312 = vmatprep.subr.bf16.mxu0 %v1257
    %1313 = vmatpush1.bf16.msra.mxu0 %v1256
    %1314 = vmatprep.subr.bf16.mxu0 %v1261
    %1315 = vmatpush1.bf16.msra.mxu0 %v1260
    %1316 = vmatprep.subr.bf16.mxu0 %v1265
    %1317 = vmatpush1.bf16.msra.mxu0 %v1264
    %1318 = vmatprep.subr.bf16.mxu0 %v1269
    %1319 = vmatpush1.bf16.msra.mxu0 %v1268
    %1320 = vmatprep.subr.bf16.mxu0 0
    %1321 = vmatpush1.bf16.msra.mxu0 0
    %1322 = vmatprep.subr.bf16.mxu0 0
    %1323 = vmatpush1.bf16.msra.mxu0 0
    %1324 = vmatprep.subr.bf16.mxu0 0
    %1325 = vmatpush1.bf16.msra.mxu0 0
    %1326 = vmatprep.subr.bf16.mxu0 0
    %1327 = vmatpush1.bf16.msra.mxu0 0
    %1328 = vmatprep.subr.bf16.mxu0 0
    %1329 = vmatpush1.bf16.msra.mxu0 0
    %1330 = vmatprep.subr.bf16.mxu0 0
    %1331 = vmatpush1.bf16.msra.mxu0 0
    %1332 = vmatprep.subr.bf16.mxu0 0
    %1333 = vmatpush1.bf16.msra.mxu0 0
    %1334 = vmatprep.subr.bf16.mxu0 0
    %1335 = vmatpush1.bf16.msra.mxu0 0
    %1336 = vmatprep.mubr.bf16.mxu0 0
    %1337 = vmatmul.mubr.bf16.gmra.mrb[0].mxu0 %v1143
    %v1338 = vpop.f32.mrb[0].mxu0
    %v1339 = vadd.f32 0.0, %v1338
    %v1340 = vpop.f32.mrb[0].mxu0
    %v1341 = vadd.f32 0.0, %v1340
    %v1342 = vpop.f32.mrb[0].mxu0
    %v1343 = vadd.f32 0.0, %v1342
    %v1344 = vpop.f32.mrb[0].mxu0
    %v1345 = vadd.f32 0.0, %v1344
    %1346 = vdwg.mxu0
    %1347 = vmatprep.subr.bf16.mxu0 %v1243
    %1348 = vmatpush1.bf16.msra.mxu0 %v1242
    %1349 = vmatprep.subr.bf16.mxu0 %v1247
    %1350 = vmatpush1.bf16.msra.mxu0 %v1246
    %1351 = vmatprep.subr.bf16.mxu0 %v1251
    %1352 = vmatpush1.bf16.msra.mxu0 %v1250
    %1353 = vmatprep.subr.bf16.mxu0 %v1255
    %1354 = vmatpush1.bf16.msra.mxu0 %v1254
    %1355 = vmatprep.subr.bf16.mxu0 %v1259
    %1356 = vmatpush1.bf16.msra.mxu0 %v1258
    %1357 = vmatprep.subr.bf16.mxu0 %v1263
    %1358 = vmatpush1.bf16.msra.mxu0 %v1262
    %1359 = vmatprep.subr.bf16.mxu0 %v1267
    %1360 = vmatpush1.bf16.msra.mxu0 %v1266
    %1361 = vmatprep.subr.bf16.mxu0 %v1271
    %1362 = vmatpush1.bf16.msra.mxu0 %v1270
    %1363 = vmatprep.subr.bf16.mxu0 0
    %1364 = vmatpush1.bf16.msra.mxu0 0
    %1365 = vmatprep.subr.bf16.mxu0 0
    %1366 = vmatpush1.bf16.msra.mxu0 0
    %1367 = vmatprep.subr.bf16.mxu0 0
    %1368 = vmatpush1.bf16.msra.mxu0 0
    %1369 = vmatprep.subr.bf16.mxu0 0
    %1370 = vmatpush1.bf16.msra.mxu0 0
    %1371 = vmatprep.subr.bf16.mxu0 0
    %1372 = vmatpush1.bf16.msra.mxu0 0
    %1373 = vmatprep.subr.bf16.mxu0 0
    %1374 = vmatpush1.bf16.msra.mxu0 0
    %1375 = vmatprep.subr.bf16.mxu0 0
    %1376 = vmatpush1.bf16.msra.mxu0 0
    %1377 = vmatprep.subr.bf16.mxu0 0
    %1378 = vmatpush1.bf16.msra.mxu0 0
    %1379 = vmatprep.mubr.bf16.mxu0 0
    %1380 = vmatmul.mubr.bf16.gmra.mrb[0].mxu0 %v1143
    %v1381 = vpop.f32.mrb[0].mxu0
    %v1382 = vadd.f32 0.0, %v1381
    %v1383 = vpop.f32.mrb[0].mxu0
    %v1384 = vadd.f32 0.0, %v1383
    %v1385 = vpop.f32.mrb[0].mxu0
    %v1386 = vadd.f32 0.0, %v1385
    %v1387 = vpop.f32.mrb[0].mxu0
    %v1388 = vadd.f32 0.0, %v1387
    %1389 = vdwg.mxu0
    %v1390 = vadd.f32 %v469, %v1339
    %v1391 = vadd.f32 %v471, %v1341
    %v1392 = vadd.f32 %v512, %v1382
    %v1393 = vadd.f32 %v514, %v1384
    %v1394 = vadd.f32 %v473, %v1343
    %v1395 = vadd.f32 %v475, %v1345
    %v1396 = vadd.f32 %v516, %v1386
    %v1397 = vadd.f32 %v518, %v1388
    %v1398 = vmul.f32 %v1390, 0.5
    %v1399 = vmul.f32 %v1394, 0.5
    %v1400 = vtanh.pop %v1398
    %v1401 = vtanh.pop %v1399
    %v1402 = vmul.f32 %v1400, 0.5
    %v1403 = vmul.f32 %v1401, 0.5
    %v1404 = vadd.f32 %v1402, 0.5
    %v1405 = vadd.f32 %v1403, 0.5
    %v1406 = vmul.f32 %v1391, 0.5
    %v1407 = vmul.f32 %v1395, 0.5
    %v1408 = vtanh.pop %v1406
    %v1409 = vtanh.pop %v1407
    %v1410 = vmul.f32 %v1408, 0.5
    %v1411 = vmul.f32 %v1409, 0.5
    %v1412 = vadd.f32 %v1410, 0.5
    %v1413 = vadd.f32 %v1411, 0.5
    %v1414 = vtanh.pop %v1392
    %v1415 = vtanh.pop %v1396
    %v1416 = vmul.f32 %v1393, 0.5
    %v1417 = vmul.f32 %v1397, 0.5
    %v1418 = vtanh.pop %v1416
    %v1419 = vtanh.pop %v1417
    %v1420 = vmul.f32 %v1418, 0.5
    %v1421 = vmul.f32 %v1419, 0.5
    %v1422 = vadd.f32 %v1420, 0.5
    %v1423 = vadd.f32 %v1421, 0.5
    %v1424 = vmul.f32 %v1412, %v574
    %v1425 = vmul.f32 %v1413, %v575
    %v1426 = vmul.f32 %v1404, %v1414
    %v1427 = vmul.f32 %v1405, %v1415
    %v1428 = vadd.f32 %v1424, %v1426
    %v1429 = vadd.f32 %v1425, %v1427
    %v1430 = vtanh.pop %v1428
    %v1431 = vtanh.pop %v1429
    %v1432 = vmul.f32 %v1422, %v1430
    %v1433 = vmul.f32 %v1423, %v1431
    %v1434 = vpack.c.bf16 %v1433, %v1432
    %1435 = vst [vmem:[#allocation2] sm:$0xff] %v1434
    %v1436 = vld [vmem:[#allocation2] sm:$0xff]
    %v1437 = vld [vmem:[#allocation2 + $0x8] sm:$0xff]
    %1438 = vmatprep.subr.bf16.mxu0 %v777
    %1439 = vmatpush1.bf16.msra.mxu0 %v776
    %1440 = vmatprep.subr.bf16.mxu0 %v781
    %1441 = vmatpush1.bf16.msra.mxu0 %v780
    %1442 = vmatprep.subr.bf16.mxu0 %v785
    %1443 = vmatpush1.bf16.msra.mxu0 %v784
    %1444 = vmatprep.subr.bf16.mxu0 %v789
    %1445 = vmatpush1.bf16.msra.mxu0 %v788
    %1446 = vmatprep.subr.bf16.mxu0 %v793
    %1447 = vmatpush1.bf16.msra.mxu0 %v792
    %1448 = vmatprep.subr.bf16.mxu0 %v797
    %1449 = vmatpush1.bf16.msra.mxu0 %v796
    %1450 = vmatprep.subr.bf16.mxu0 %v801
    %1451 = vmatpush1.bf16.msra.mxu0 %v800
    %1452 = vmatprep.subr.bf16.mxu0 %v805
    %1453 = vmatpush1.bf16.msra.mxu0 %v804
    %1454 = vmatprep.subr.bf16.mxu0 %v809
    %1455 = vmatpush1.bf16.msra.mxu0 %v808
    %1456 = vmatprep.subr.bf16.mxu0 %v813
    %1457 = vmatpush1.bf16.msra.mxu0 %v812
    %1458 = vmatprep.subr.bf16.mxu0 %v817
    %1459 = vmatpush1.bf16.msra.mxu0 %v816
    %1460 = vmatprep.subr.bf16.mxu0 %v821
    %1461 = vmatpush1.bf16.msra.mxu0 %v820
    %1462 = vmatprep.subr.bf16.mxu0 %v825
    %1463 = vmatpush1.bf16.msra.mxu0 %v824
    %1464 = vmatprep.subr.bf16.mxu0 %v829
    %1465 = vmatpush1.bf16.msra.mxu0 %v828
    %1466 = vmatprep.subr.bf16.mxu0 %v833
    %1467 = vmatpush1.bf16.msra.mxu0 %v832
    %1468 = vmatprep.subr.bf16.mxu0 %v837
    %1469 = vmatpush1.bf16.msra.mxu0 %v836
    %1470 = vmatprep.mubr.bf16.mxu0 %v1437
    %1471 = vmatmul.mubr.bf16.gmra.mrb[0].mxu0 %v1436
    %v1472 = vpop.f32.mrb[0].mxu0
    %v1473 = vadd.f32 %v525, %v1472
    %v1474 = vpop.f32.mrb[0].mxu0
    %v1475 = vadd.f32 %v529, %v1474
    %v1476 = vpop.f32.mrb[0].mxu0
    %v1477 = vadd.f32 %v525, %v1476
    %v1478 = vpop.f32.mrb[0].mxu0
    %v1479 = vadd.f32 %v529, %v1478
    %1480 = vdwg.mxu0
    %1481 = vmatprep.subr.bf16.mxu0 %v779
    %1482 = vmatpush1.bf16.msra.mxu0 %v778
    %1483 = vmatprep.subr.bf16.mxu0 %v783
    %1484 = vmatpush1.bf16.msra.mxu0 %v782
    %1485 = vmatprep.subr.bf16.mxu0 %v787
    %1486 = vmatpush1.bf16.msra.mxu0 %v786
    %1487 = vmatprep.subr.bf16.mxu0 %v791
    %1488 = vmatpush1.bf16.msra.mxu0 %v790
    %1489 = vmatprep.subr.bf16.mxu0 %v795
    %1490 = vmatpush1.bf16.msra.mxu0 %v794
    %1491 = vmatprep.subr.bf16.mxu0 %v799
    %1492 = vmatpush1.bf16.msra.mxu0 %v798
    %1493 = vmatprep.subr.bf16.mxu0 %v803
    %1494 = vmatpush1.bf16.msra.mxu0 %v802
    %1495 = vmatprep.subr.bf16.mxu0 %v807
    %1496 = vmatpush1.bf16.msra.mxu0 %v806
    %1497 = vmatprep.subr.bf16.mxu0 %v811
    %1498 = vmatpush1.bf16.msra.mxu0 %v810
    %1499 = vmatprep.subr.bf16.mxu0 %v815
    %1500 = vmatpush1.bf16.msra.mxu0 %v814
    %1501 = vmatprep.subr.bf16.mxu0 %v819
    %1502 = vmatpush1.bf16.msra.mxu0 %v818
    %1503 = vmatprep.subr.bf16.mxu0 %v823
    %1504 = vmatpush1.bf16.msra.mxu0 %v822
    %1505 = vmatprep.subr.bf16.mxu0 %v827
    %1506 = vmatpush1.bf16.msra.mxu0 %v826
    %1507 = vmatprep.subr.bf16.mxu0 %v831
    %1508 = vmatpush1.bf16.msra.mxu0 %v830
    %1509 = vmatprep.subr.bf16.mxu0 %v835
    %1510 = vmatpush1.bf16.msra.mxu0 %v834
    %1511 = vmatprep.subr.bf16.mxu0 %v839
    %1512 = vmatpush1.bf16.msra.mxu0 %v838
    %1513 = vmatprep.mubr.bf16.mxu0 %v1437
    %1514 = vmatmul.mubr.bf16.gmra.mrb[0].mxu0 %v1436
    %v1515 = vpop.f32.mrb[0].mxu0
    %v1516 = vadd.f32 %v533, %v1515
    %v1517 = vpop.f32.mrb[0].mxu0
    %v1518 = vadd.f32 %v537, %v1517
    %v1519 = vpop.f32.mrb[0].mxu0
    %v1520 = vadd.f32 %v533, %v1519
    %v1521 = vpop.f32.mrb[0].mxu0
    %v1522 = vadd.f32 %v537, %v1521
    %1523 = vdwg.mxu0
    %v1524 = vmul.f32 %v1473, 0.5
    %v1525 = vmul.f32 %v1477, 0.5
    %v1526 = vtanh.pop %v1524
    %v1527 = vtanh.pop %v1525
    %v1528 = vmul.f32 %v1526, 0.5
    %v1529 = vmul.f32 %v1527, 0.5
    %v1530 = vadd.f32 %v1528, 0.5
    %v1531 = vadd.f32 %v1529, 0.5
    %v1532 = vmul.f32 %v1475, 0.5
    %v1533 = vmul.f32 %v1479, 0.5
    %v1534 = vtanh.pop %v1532
    %v1535 = vtanh.pop %v1533
    %v1536 = vmul.f32 %v1534, 0.5
    %v1537 = vmul.f32 %v1535, 0.5
    %v1538 = vadd.f32 %v1536, 0.5
    %v1539 = vadd.f32 %v1537, 0.5
    %v1540 = vtanh.pop %v1516
    %v1541 = vtanh.pop %v1520
    %v1542 = vmul.f32 %v1518, 0.5
    %v1543 = vmul.f32 %v1522, 0.5
    %v1544 = vtanh.pop %v1542
    %v1545 = vtanh.pop %v1543
    %v1546 = vmul.f32 %v1544, 0.5
    %v1547 = vmul.f32 %v1545, 0.5
    %v1548 = vadd.f32 %v1546, 0.5
    %v1549 = vadd.f32 %v1547, 0.5
    %v1550 = vmul.f32 %v1538, %v1020
    %v1551 = vmul.f32 %v1539, %v1021
    %v1552 = vmul.f32 %v1530, %v1540
    %v1553 = vmul.f32 %v1531, %v1541
    %v1554 = vadd.f32 %v1550, %v1552
    %v1555 = vadd.f32 %v1551, %v1553
    %v1556 = vtanh.pop %v1554
    %v1557 = vtanh.pop %v1555
    %v1558 = vmul.f32 %v1548, %v1556
    %v1559 = vmul.f32 %v1549, %v1557
    %v1560 = vpack.c.bf16 %v1559, %v1558
    %1561 = vst [vmem:[#allocation2 + $0x8] sm:$0xff] %v1560
    %1562 = vmatprep.subr.bf16.mxu0 0
    %1563 = vmatpush1.bf16.msra.mxu0 %v1066
    %1564 = vmatprep.subr.bf16.mxu0 0
    %1565 = vmatpush1.bf16.msra.mxu0 %v1067
    %1566 = vmatprep.subr.bf16.mxu0 0
    %1567 = vmatpush1.bf16.msra.mxu0 %v1068
    %1568 = vmatprep.subr.bf16.mxu0 0
    %1569 = vmatpush1.bf16.msra.mxu0 %v1069
    %1570 = vmatprep.subr.bf16.mxu0 0
    %1571 = vmatpush1.bf16.msra.mxu0 %v1070
    %1572 = vmatprep.subr.bf16.mxu0 0
    %1573 = vmatpush1.bf16.msra.mxu0 %v1071
    %1574 = vmatprep.subr.bf16.mxu0 0
    %1575 = vmatpush1.bf16.msra.mxu0 %v1072
    %1576 = vmatprep.subr.bf16.mxu0 0
    %1577 = vmatpush1.bf16.msra.mxu0 %v1073
    %1578 = vmatprep.subr.bf16.mxu0 0
    %1579 = vmatpush1.bf16.msra.mxu0 0
    %1580 = vmatprep.subr.bf16.mxu0 0
    %1581 = vmatpush1.bf16.msra.mxu0 0
    %1582 = vmatprep.subr.bf16.mxu0 0
    %1583 = vmatpush1.bf16.msra.mxu0 0
    %1584 = vmatprep.subr.bf16.mxu0 0
    %1585 = vmatpush1.bf16.msra.mxu0 0
    %1586 = vmatprep.subr.bf16.mxu0 0
    %1587 = vmatpush1.bf16.msra.mxu0 0
    %1588 = vmatprep.subr.bf16.mxu0 0
    %1589 = vmatpush1.bf16.msra.mxu0 0
    %1590 = vmatprep.subr.bf16.mxu0 0
    %1591 = vmatpush1.bf16.msra.mxu0 0
    %1592 = vmatprep.subr.bf16.mxu0 0
    %1593 = vmatpush1.bf16.msra.mxu0 0
    %1594 = vmatprep.mubr.bf16.mxu0 0
    %1595 = vmatmul.mubr.bf16.gmra.mrb[0].mxu0 %v1560
    %v1596 = vpop.f32.mrb[0].mxu0
    %v1597 = vadd.f32 %v1032, %v1596
    %v1598 = vpop.f32.mrb[0].mxu0
    %v1599 = vpop.f32.mrb[0].mxu0
    %v1600 = vadd.f32 %v1032, %v1599
    %v1601 = vpop.f32.mrb[0].mxu0
    %1602 = vdwg.mxu0
    %1603 = vmax.xlane.f32.xlu0 %v1597
    %v1604 = vpop.xlane.xlu0 %1603
    %1605 = vmax.xlane.f32.xlu0 %v1600
    %v1606 = vpop.xlane.xlu0 %1605
    %v1607 = vsub.f32 %v1597, %v1604
    %v1608 = vsub.f32 %v1600, %v1606
    %v1609 = vmul.f32 %v1607, 1.442695
    %v1610 = vpow.pop %v1609
    %v1611 = vmul.f32 %v1608, 1.442695
    %v1612 = vpow.pop %v1611
    %1613 = vadd.xlane.f32.xlu0 %v1610
    %v1614 = vpop.xlane.xlu0 %1613
    %1615 = vadd.xlane.f32.xlu0 %v1612
    %v1616 = vpop.xlane.xlu0 %1615
    %v1617 = vrcp.pop %v1614
    %v1618 = vrcp.pop %v1616
    %v1619 = vmul.f32 %v1610, %v1617
    %v1620 = vmul.f32 %v1612, %v1618
    %1621 = vst [vmem:[#allocation12 + $0x8] sm:$0xff] %v1619
    %1622 = vst [vmem:[#allocation12 + $0x28] sm:$0xff] %v1620
    %v1623 = vld [vmem:[#allocation2] sm:$0xff]
    %1624 = vmatprep.subr.bf16.mxu0 %v1241
    %1625 = vmatpush1.bf16.msra.mxu0 %v1240
    %1626 = vmatprep.subr.bf16.mxu0 %v1245
    %1627 = vmatpush1.bf16.msra.mxu0 %v1244
    %1628 = vmatprep.subr.bf16.mxu0 %v1249
    %1629 = vmatpush1.bf16.msra.mxu0 %v1248
    %1630 = vmatprep.subr.bf16.mxu0 %v1253
    %1631 = vmatpush1.bf16.msra.mxu0 %v1252
    %1632 = vmatprep.subr.bf16.mxu0 %v1257
    %1633 = vmatpush1.bf16.msra.mxu0 %v1256
    %1634 = vmatprep.subr.bf16.mxu0 %v1261
    %1635 = vmatpush1.bf16.msra.mxu0 %v1260
    %1636 = vmatprep.subr.bf16.mxu0 %v1265
    %1637 = vmatpush1.bf16.msra.mxu0 %v1264
    %1638 = vmatprep.subr.bf16.mxu0 %v1269
    %1639 = vmatpush1.bf16.msra.mxu0 %v1268
    %1640 = vmatprep.subr.bf16.mxu0 0
    %1641 = vmatpush1.bf16.msra.mxu0 0
    %1642 = vmatprep.subr.bf16.mxu0 0
    %1643 = vmatpush1.bf16.msra.mxu0 0
    %1644 = vmatprep.subr.bf16.mxu0 0
    %1645 = vmatpush1.bf16.msra.mxu0 0
    %1646 = vmatprep.subr.bf16.mxu0 0
    %1647 = vmatpush1.bf16.msra.mxu0 0
    %1648 = vmatprep.subr.bf16.mxu0 0
    %1649 = vmatpush1.bf16.msra.mxu0 0
    %1650 = vmatprep.subr.bf16.mxu0 0
    %1651 = vmatpush1.bf16.msra.mxu0 0
    %1652 = vmatprep.subr.bf16.mxu0 0
    %1653 = vmatpush1.bf16.msra.mxu0 0
    %1654 = vmatprep.subr.bf16.mxu0 0
    %1655 = vmatpush1.bf16.msra.mxu0 0
    %1656 = vmatprep.mubr.bf16.mxu0 0
    %1657 = vmatmul.mubr.bf16.gmra.mrb[0].mxu0 %v1623
    %v1658 = vpop.f32.mrb[0].mxu0
    %v1659 = vadd.f32 0.0, %v1658
    %v1660 = vpop.f32.mrb[0].mxu0
    %v1661 = vadd.f32 0.0, %v1660
    %v1662 = vpop.f32.mrb[0].mxu0
    %v1663 = vadd.f32 0.0, %v1662
    %v1664 = vpop.f32.mrb[0].mxu0
    %v1665 = vadd.f32 0.0, %v1664
    %1666 = vdwg.mxu0
    %1667 = vmatprep.subr.bf16.mxu0 %v1243
    %1668 = vmatpush1.bf16.msra.mxu0 %v1242
    %1669 = vmatprep.subr.bf16.mxu0 %v1247
    %1670 = vmatpush1.bf16.msra.mxu0 %v1246
    %1671 = vmatprep.subr.bf16.mxu0 %v1251
    %1672 = vmatpush1.bf16.msra.mxu0 %v1250
    %1673 = vmatprep.subr.bf16.mxu0 %v1255
    %1674 = vmatpush1.bf16.msra.mxu0 %v1254
    %1675 = vmatprep.subr.bf16.mxu0 %v1259
    %1676 = vmatpush1.bf16.msra.mxu0 %v1258
    %1677 = vmatprep.subr.bf16.mxu0 %v1263
    %1678 = vmatpush1.bf16.msra.mxu0 %v1262
    %1679 = vmatprep.subr.bf16.mxu0 %v1267
    %1680 = vmatpush1.bf16.msra.mxu0 %v1266
    %1681 = vmatprep.subr.bf16.mxu0 %v1271
    %1682 = vmatpush1.bf16.msra.mxu0 %v1270
    %1683 = vmatprep.subr.bf16.mxu0 0
    %1684 = vmatpush1.bf16.msra.mxu0 0
    %1685 = vmatprep.subr.bf16.mxu0 0
    %1686 = vmatpush1.bf16.msra.mxu0 0
    %1687 = vmatprep.subr.bf16.mxu0 0
    %1688 = vmatpush1.bf16.msra.mxu0 0
    %1689 = vmatprep.subr.bf16.mxu0 0
    %1690 = vmatpush1.bf16.msra.mxu0 0
    %1691 = vmatprep.subr.bf16.mxu0 0
    %1692 = vmatpush1.bf16.msra.mxu0 0
    %1693 = vmatprep.subr.bf16.mxu0 0
    %1694 = vmatpush1.bf16.msra.mxu0 0
    %1695 = vmatprep.subr.bf16.mxu0 0
    %1696 = vmatpush1.bf16.msra.mxu0 0
    %1697 = vmatprep.subr.bf16.mxu0 0
    %1698 = vmatpush1.bf16.msra.mxu0 0
    %1699 = vmatprep.mubr.bf16.mxu0 0
    %1700 = vmatmul.mubr.bf16.gmra.mrb[0].mxu0 %v1623
    %v1701 = vpop.f32.mrb[0].mxu0
    %v1702 = vadd.f32 0.0, %v1701
    %v1703 = vpop.f32.mrb[0].mxu0
    %v1704 = vadd.f32 0.0, %v1703
    %v1705 = vpop.f32.mrb[0].mxu0
    %v1706 = vadd.f32 0.0, %v1705
    %v1707 = vpop.f32.mrb[0].mxu0
    %v1708 = vadd.f32 0.0, %v1707
    %1709 = vdwg.mxu0
    %v1710 = vadd.f32 %v469, %v1659
    %v1711 = vadd.f32 %v471, %v1661
    %v1712 = vadd.f32 %v512, %v1702
    %v1713 = vadd.f32 %v514, %v1704
    %v1714 = vadd.f32 %v473, %v1663
    %v1715 = vadd.f32 %v475, %v1665
    %v1716 = vadd.f32 %v516, %v1706
    %v1717 = vadd.f32 %v518, %v1708
    %v1718 = vmul.f32 %v1710, 0.5
    %v1719 = vmul.f32 %v1714, 0.5
    %v1720 = vtanh.pop %v1718
    %v1721 = vtanh.pop %v1719
    %v1722 = vmul.f32 %v1720, 0.5
    %v1723 = vmul.f32 %v1721, 0.5
    %v1724 = vadd.f32 %v1722, 0.5
    %v1725 = vadd.f32 %v1723, 0.5
    %v1726 = vmul.f32 %v1711, 0.5
    %v1727 = vmul.f32 %v1715, 0.5
    %v1728 = vtanh.pop %v1726
    %v1729 = vtanh.pop %v1727
    %v1730 = vmul.f32 %v1728, 0.5
    %v1731 = vmul.f32 %v1729, 0.5
    %v1732 = vadd.f32 %v1730, 0.5
    %v1733 = vadd.f32 %v1731, 0.5
    %v1734 = vtanh.pop %v1712
    %v1735 = vtanh.pop %v1716
    %v1736 = vmul.f32 %v1713, 0.5
    %v1737 = vmul.f32 %v1717, 0.5
    %v1738 = vtanh.pop %v1736
    %v1739 = vtanh.pop %v1737
    %v1740 = vmul.f32 %v1738, 0.5
    %v1741 = vmul.f32 %v1739, 0.5
    %v1742 = vadd.f32 %v1740, 0.5
    %v1743 = vadd.f32 %v1741, 0.5
    %v1744 = vmul.f32 %v1732, %v1428
    %v1745 = vmul.f32 %v1733, %v1429
    %v1746 = vmul.f32 %v1724, %v1734
    %v1747 = vmul.f32 %v1725, %v1735
    %v1748 = vadd.f32 %v1744, %v1746
    %v1749 = vadd.f32 %v1745, %v1747
    %v1750 = vtanh.pop %v1748
    %v1751 = vtanh.pop %v1749
    %v1752 = vmul.f32 %v1742, %v1750
    %v1753 = vmul.f32 %v1743, %v1751
    %v1754 = vpack.c.bf16 %v1753, %v1752
    %1755 = vst [vmem:[#allocation2] sm:$0xff] %v1754
    %v1756 = vld [vmem:[#allocation2] sm:$0xff]
    %v1757 = vld [vmem:[#allocation2 + $0x8] sm:$0xff]
    %1758 = vmatprep.subr.bf16.mxu0 %v777
    %1759 = vmatpush1.bf16.msra.mxu0 %v776
    %1760 = vmatprep.subr.bf16.mxu0 %v781
    %1761 = vmatpush1.bf16.msra.mxu0 %v780
    %1762 = vmatprep.subr.bf16.mxu0 %v785
    %1763 = vmatpush1.bf16.msra.mxu0 %v784
    %1764 = vmatprep.subr.bf16.mxu0 %v789
    %1765 = vmatpush1.bf16.msra.mxu0 %v788
    %1766 = vmatprep.subr.bf16.mxu0 %v793
    %1767 = vmatpush1.bf16.msra.mxu0 %v792
    %1768 = vmatprep.subr.bf16.mxu0 %v797
    %1769 = vmatpush1.bf16.msra.mxu0 %v796
    %1770 = vmatprep.subr.bf16.mxu0 %v801
    %1771 = vmatpush1.bf16.msra.mxu0 %v800
    %1772 = vmatprep.subr.bf16.mxu0 %v805
    %1773 = vmatpush1.bf16.msra.mxu0 %v804
    %1774 = vmatprep.subr.bf16.mxu0 %v809
    %1775 = vmatpush1.bf16.msra.mxu0 %v808
    %1776 = vmatprep.subr.bf16.mxu0 %v813
    %1777 = vmatpush1.bf16.msra.mxu0 %v812
    %1778 = vmatprep.subr.bf16.mxu0 %v817
    %1779 = vmatpush1.bf16.msra.mxu0 %v816
    %1780 = vmatprep.subr.bf16.mxu0 %v821
    %1781 = vmatpush1.bf16.msra.mxu0 %v820
    %1782 = vmatprep.subr.bf16.mxu0 %v825
    %1783 = vmatpush1.bf16.msra.mxu0 %v824
    %1784 = vmatprep.subr.bf16.mxu0 %v829
    %1785 = vmatpush1.bf16.msra.mxu0 %v828
    %1786 = vmatprep.subr.bf16.mxu0 %v833
    %1787 = vmatpush1.bf16.msra.mxu0 %v832
    %1788 = vmatprep.subr.bf16.mxu0 %v837
    %1789 = vmatpush1.bf16.msra.mxu0 %v836
    %1790 = vmatprep.mubr.bf16.mxu0 %v1757
    %1791 = vmatmul.mubr.bf16.gmra.mrb[0].mxu0 %v1756
    %v1792 = vpop.f32.mrb[0].mxu0
    %v1793 = vadd.f32 %v525, %v1792
    %v1794 = vpop.f32.mrb[0].mxu0
    %v1795 = vadd.f32 %v529, %v1794
    %v1796 = vpop.f32.mrb[0].mxu0
    %v1797 = vadd.f32 %v525, %v1796
    %v1798 = vpop.f32.mrb[0].mxu0
    %v1799 = vadd.f32 %v529, %v1798
    %1800 = vdwg.mxu0
    %1801 = vmatprep.subr.bf16.mxu0 %v779
    %1802 = vmatpush1.bf16.msra.mxu0 %v778
    %1803 = vmatprep.subr.bf16.mxu0 %v783
    %1804 = vmatpush1.bf16.msra.mxu0 %v782
    %1805 = vmatprep.subr.bf16.mxu0 %v787
    %1806 = vmatpush1.bf16.msra.mxu0 %v786
    %1807 = vmatprep.subr.bf16.mxu0 %v791
    %1808 = vmatpush1.bf16.msra.mxu0 %v790
    %1809 = vmatprep.subr.bf16.mxu0 %v795
    %1810 = vmatpush1.bf16.msra.mxu0 %v794
    %1811 = vmatprep.subr.bf16.mxu0 %v799
    %1812 = vmatpush1.bf16.msra.mxu0 %v798
    %1813 = vmatprep.subr.bf16.mxu0 %v803
    %1814 = vmatpush1.bf16.msra.mxu0 %v802
    %1815 = vmatprep.subr.bf16.mxu0 %v807
    %1816 = vmatpush1.bf16.msra.mxu0 %v806
    %1817 = vmatprep.subr.bf16.mxu0 %v811
    %1818 = vmatpush1.bf16.msra.mxu0 %v810
    %1819 = vmatprep.subr.bf16.mxu0 %v815
    %1820 = vmatpush1.bf16.msra.mxu0 %v814
    %1821 = vmatprep.subr.bf16.mxu0 %v819
    %1822 = vmatpush1.bf16.msra.mxu0 %v818
    %1823 = vmatprep.subr.bf16.mxu0 %v823
    %1824 = vmatpush1.bf16.msra.mxu0 %v822
    %1825 = vmatprep.subr.bf16.mxu0 %v827
    %1826 = vmatpush1.bf16.msra.mxu0 %v826
    %1827 = vmatprep.subr.bf16.mxu0 %v831
    %1828 = vmatpush1.bf16.msra.mxu0 %v830
    %1829 = vmatprep.subr.bf16.mxu0 %v835
    %1830 = vmatpush1.bf16.msra.mxu0 %v834
    %1831 = vmatprep.subr.bf16.mxu0 %v839
    %1832 = vmatpush1.bf16.msra.mxu0 %v838
    %1833 = vmatprep.mubr.bf16.mxu0 %v1757
    %1834 = vmatmul.mubr.bf16.gmra.mrb[0].mxu0 %v1756
    %v1835 = vpop.f32.mrb[0].mxu0
    %v1836 = vadd.f32 %v533, %v1835
    %v1837 = vpop.f32.mrb[0].mxu0
    %v1838 = vadd.f32 %v537, %v1837
    %v1839 = vpop.f32.mrb[0].mxu0
    %v1840 = vadd.f32 %v533, %v1839
    %v1841 = vpop.f32.mrb[0].mxu0
    %v1842 = vadd.f32 %v537, %v1841
    %1843 = vdwg.mxu0
    %v1844 = vmul.f32 %v1793, 0.5
    %v1845 = vmul.f32 %v1797, 0.5
    %v1846 = vtanh.pop %v1844
    %v1847 = vtanh.pop %v1845
    %v1848 = vmul.f32 %v1846, 0.5
    %v1849 = vmul.f32 %v1847, 0.5
    %v1850 = vadd.f32 %v1848, 0.5
    %v1851 = vadd.f32 %v1849, 0.5
    %v1852 = vmul.f32 %v1795, 0.5
    %v1853 = vmul.f32 %v1799, 0.5
    %v1854 = vtanh.pop %v1852
    %v1855 = vtanh.pop %v1853
    %v1856 = vmul.f32 %v1854, 0.5
    %v1857 = vmul.f32 %v1855, 0.5
    %v1858 = vadd.f32 %v1856, 0.5
    %v1859 = vadd.f32 %v1857, 0.5
    %v1860 = vtanh.pop %v1836
    %v1861 = vtanh.pop %v1840
    %v1862 = vmul.f32 %v1838, 0.5
    %v1863 = vmul.f32 %v1842, 0.5
    %v1864 = vtanh.pop %v1862
    %v1865 = vtanh.pop %v1863
    %v1866 = vmul.f32 %v1864, 0.5
    %v1867 = vmul.f32 %v1865, 0.5
    %v1868 = vadd.f32 %v1866, 0.5
    %v1869 = vadd.f32 %v1867, 0.5
    %v1870 = vmul.f32 %v1858, %v1554
    %v1871 = vmul.f32 %v1859, %v1555
    %v1872 = vmul.f32 %v1850, %v1860
    %v1873 = vmul.f32 %v1851, %v1861
    %v1874 = vadd.f32 %v1870, %v1872
    %v1875 = vadd.f32 %v1871, %v1873
    %v1876 = vtanh.pop %v1874
    %v1877 = vtanh.pop %v1875
    %v1878 = vmul.f32 %v1868, %v1876
    %v1879 = vmul.f32 %v1869, %v1877
    %v1880 = vpack.c.bf16 %v1879, %v1878
    %1881 = vst [vmem:[#allocation2 + $0x8] sm:$0xff] %v1880
    %1882 = vmatprep.subr.bf16.mxu0 0
    %1883 = vmatpush1.bf16.msra.mxu0 %v1066
    %1884 = vmatprep.subr.bf16.mxu0 0
    %1885 = vmatpush1.bf16.msra.mxu0 %v1067
    %1886 = vmatprep.subr.bf16.mxu0 0
    %1887 = vmatpush1.bf16.msra.mxu0 %v1068
    %1888 = vmatprep.subr.bf16.mxu0 0
    %1889 = vmatpush1.bf16.msra.mxu0 %v1069
    %1890 = vmatprep.subr.bf16.mxu0 0
    %1891 = vmatpush1.bf16.msra.mxu0 %v1070
    %1892 = vmatprep.subr.bf16.mxu0 0
    %1893 = vmatpush1.bf16.msra.mxu0 %v1071
    %1894 = vmatprep.subr.bf16.mxu0 0
    %1895 = vmatpush1.bf16.msra.mxu0 %v1072
    %1896 = vmatprep.subr.bf16.mxu0 0
    %1897 = vmatpush1.bf16.msra.mxu0 %v1073
    %1898 = vmatprep.subr.bf16.mxu0 0
    %1899 = vmatpush1.bf16.msra.mxu0 0
    %1900 = vmatprep.subr.bf16.mxu0 0
    %1901 = vmatpush1.bf16.msra.mxu0 0
    %1902 = vmatprep.subr.bf16.mxu0 0
    %1903 = vmatpush1.bf16.msra.mxu0 0
    %1904 = vmatprep.subr.bf16.mxu0 0
    %1905 = vmatpush1.bf16.msra.mxu0 0
    %1906 = vmatprep.subr.bf16.mxu0 0
    %1907 = vmatpush1.bf16.msra.mxu0 0
    %1908 = vmatprep.subr.bf16.mxu0 0
    %1909 = vmatpush1.bf16.msra.mxu0 0
    %1910 = vmatprep.subr.bf16.mxu0 0
    %1911 = vmatpush1.bf16.msra.mxu0 0
    %1912 = vmatprep.subr.bf16.mxu0 0
    %1913 = vmatpush1.bf16.msra.mxu0 0
    %1914 = vmatprep.mubr.bf16.mxu0 0
    %1915 = vmatmul.mubr.bf16.gmra.mrb[0].mxu0 %v1880
    %v1916 = vpop.f32.mrb[0].mxu0
    %v1917 = vadd.f32 %v1032, %v1916
    %v1918 = vpop.f32.mrb[0].mxu0
    %v1919 = vpop.f32.mrb[0].mxu0
    %v1920 = vadd.f32 %v1032, %v1919
    %v1921 = vpop.f32.mrb[0].mxu0
    %1922 = vdwg.mxu0
    %1923 = vmax.xlane.f32.xlu0 %v1917
    %v1924 = vpop.xlane.xlu0 %1923
    %1925 = vmax.xlane.f32.xlu0 %v1920
    %v1926 = vpop.xlane.xlu0 %1925
    %v1927 = vsub.f32 %v1917, %v1924
    %v1928 = vsub.f32 %v1920, %v1926
    %v1929 = vmul.f32 %v1927, 1.442695
    %v1930 = vpow.pop %v1929
    %v1931 = vmul.f32 %v1928, 1.442695
    %v1932 = vpow.pop %v1931
    %1933 = vadd.xlane.f32.xlu0 %v1930
    %v1934 = vpop.xlane.xlu0 %1933
    %1935 = vadd.xlane.f32.xlu0 %v1932
    %v1936 = vpop.xlane.xlu0 %1935
    %v1937 = vrcp.pop %v1934
    %v1938 = vrcp.pop %v1936
    %v1939 = vmul.f32 %v1930, %v1937
    %v1940 = vmul.f32 %v1932, %v1938
    %1941 = vst [vmem:[#allocation12 + $0x10] sm:$0xff] %v1939
    %1942 = vst [vmem:[#allocation12 + $0x30] sm:$0xff] %v1940
    %v1943 = vld [vmem:[#allocation2] sm:$0xff]
    %1944 = vmatprep.subr.bf16.mxu0 %v1241
    %1945 = vmatpush1.bf16.msra.mxu0 %v1240
    %1946 = vmatprep.subr.bf16.mxu0 %v1245
    %1947 = vmatpush1.bf16.msra.mxu0 %v1244
    %1948 = vmatprep.subr.bf16.mxu0 %v1249
    %1949 = vmatpush1.bf16.msra.mxu0 %v1248
    %1950 = vmatprep.subr.bf16.mxu0 %v1253
    %1951 = vmatpush1.bf16.msra.mxu0 %v1252
    %1952 = vmatprep.subr.bf16.mxu0 %v1257
    %1953 = vmatpush1.bf16.msra.mxu0 %v1256
    %1954 = vmatprep.subr.bf16.mxu0 %v1261
    %1955 = vmatpush1.bf16.msra.mxu0 %v1260
    %1956 = vmatprep.subr.bf16.mxu0 %v1265
    %1957 = vmatpush1.bf16.msra.mxu0 %v1264
    %1958 = vmatprep.subr.bf16.mxu0 %v1269
    %1959 = vmatpush1.bf16.msra.mxu0 %v1268
    %1960 = vmatprep.subr.bf16.mxu0 0
    %1961 = vmatpush1.bf16.msra.mxu0 0
    %1962 = vmatprep.subr.bf16.mxu0 0
    %1963 = vmatpush1.bf16.msra.mxu0 0
    %1964 = vmatprep.subr.bf16.mxu0 0
    %1965 = vmatpush1.bf16.msra.mxu0 0
    %1966 = vmatprep.subr.bf16.mxu0 0
    %1967 = vmatpush1.bf16.msra.mxu0 0
    %1968 = vmatprep.subr.bf16.mxu0 0
    %1969 = vmatpush1.bf16.msra.mxu0 0
    %1970 = vmatprep.subr.bf16.mxu0 0
    %1971 = vmatpush1.bf16.msra.mxu0 0
    %1972 = vmatprep.subr.bf16.mxu0 0
    %1973 = vmatpush1.bf16.msra.mxu0 0
    %1974 = vmatprep.subr.bf16.mxu0 0
    %1975 = vmatpush1.bf16.msra.mxu0 0
    %1976 = vmatprep.mubr.bf16.mxu0 0
    %1977 = vmatmul.mubr.bf16.gmra.mrb[0].mxu0 %v1943
    %v1978 = vpop.f32.mrb[0].mxu0
    %v1979 = vadd.f32 0.0, %v1978
    %v1980 = vpop.f32.mrb[0].mxu0
    %v1981 = vadd.f32 0.0, %v1980
    %v1982 = vpop.f32.mrb[0].mxu0
    %v1983 = vadd.f32 0.0, %v1982
    %v1984 = vpop.f32.mrb[0].mxu0
    %v1985 = vadd.f32 0.0, %v1984
    %1986 = vdwg.mxu0
    %1987 = vmatprep.subr.bf16.mxu0 %v1243
    %1988 = vmatpush1.bf16.msra.mxu0 %v1242
    %1989 = vmatprep.subr.bf16.mxu0 %v1247
    %1990 = vmatpush1.bf16.msra.mxu0 %v1246
    %1991 = vmatprep.subr.bf16.mxu0 %v1251
    %1992 = vmatpush1.bf16.msra.mxu0 %v1250
    %1993 = vmatprep.subr.bf16.mxu0 %v1255
    %1994 = vmatpush1.bf16.msra.mxu0 %v1254
    %1995 = vmatprep.subr.bf16.mxu0 %v1259
    %1996 = vmatpush1.bf16.msra.mxu0 %v1258
    %1997 = vmatprep.subr.bf16.mxu0 %v1263
    %1998 = vmatpush1.bf16.msra.mxu0 %v1262
    %1999 = vmatprep.subr.bf16.mxu0 %v1267
    %2000 = vmatpush1.bf16.msra.mxu0 %v1266
    %2001 = vmatprep.subr.bf16.mxu0 %v1271
    %2002 = vmatpush1.bf16.msra.mxu0 %v1270
    %2003 = vmatprep.subr.bf16.mxu0 0
    %2004 = vmatpush1.bf16.msra.mxu0 0
    %2005 = vmatprep.subr.bf16.mxu0 0
    %2006 = vmatpush1.bf16.msra.mxu0 0
    %2007 = vmatprep.subr.bf16.mxu0 0
    %2008 = vmatpush1.bf16.msra.mxu0 0
    %2009 = vmatprep.subr.bf16.mxu0 0
    %2010 = vmatpush1.bf16.msra.mxu0 0
    %2011 = vmatprep.subr.bf16.mxu0 0
    %2012 = vmatpush1.bf16.msra.mxu0 0
    %2013 = vmatprep.subr.bf16.mxu0 0
    %2014 = vmatpush1.bf16.msra.mxu0 0
    %2015 = vmatprep.subr.bf16.mxu0 0
    %2016 = vmatpush1.bf16.msra.mxu0 0
    %2017 = vmatprep.subr.bf16.mxu0 0
    %2018 = vmatpush1.bf16.msra.mxu0 0
    %2019 = vmatprep.mubr.bf16.mxu0 0
    %2020 = vmatmul.mubr.bf16.gmra.mrb[0].mxu0 %v1943
    %v2021 = vpop.f32.mrb[0].mxu0
    %v2022 = vadd.f32 0.0, %v2021
    %v2023 = vpop.f32.mrb[0].mxu0
    %v2024 = vadd.f32 0.0, %v2023
    %v2025 = vpop.f32.mrb[0].mxu0
    %v2026 = vadd.f32 0.0, %v2025
    %v2027 = vpop.f32.mrb[0].mxu0
    %v2028 = vadd.f32 0.0, %v2027
    %2029 = vdwg.mxu0
    %v2030 = vadd.f32 %v469, %v1979
    %v2031 = vadd.f32 %v471, %v1981
    %v2032 = vadd.f32 %v512, %v2022
    %v2033 = vadd.f32 %v514, %v2024
    %v2034 = vadd.f32 %v473, %v1983
    %v2035 = vadd.f32 %v475, %v1985
    %v2036 = vadd.f32 %v516, %v2026
    %v2037 = vadd.f32 %v518, %v2028
    %v2038 = vmul.f32 %v2030, 0.5
    %v2039 = vmul.f32 %v2034, 0.5
    %v2040 = vtanh.pop %v2038
    %v2041 = vtanh.pop %v2039
    %v2042 = vmul.f32 %v2040, 0.5
    %v2043 = vmul.f32 %v2041, 0.5
    %v2044 = vadd.f32 %v2042, 0.5
    %v2045 = vadd.f32 %v2043, 0.5
    %v2046 = vmul.f32 %v2031, 0.5
    %v2047 = vmul.f32 %v2035, 0.5
    %v2048 = vtanh.pop %v2046
    %v2049 = vtanh.pop %v2047
    %v2050 = vmul.f32 %v2048, 0.5
    %v2051 = vmul.f32 %v2049, 0.5
    %v2052 = vadd.f32 %v2050, 0.5
    %v2053 = vadd.f32 %v2051, 0.5
    %v2054 = vtanh.pop %v2032
    %v2055 = vtanh.pop %v2036
    %v2056 = vmul.f32 %v2033, 0.5
    %v2057 = vmul.f32 %v2037, 0.5
    %v2058 = vtanh.pop %v2056
    %v2059 = vtanh.pop %v2057
    %v2060 = vmul.f32 %v2058, 0.5
    %v2061 = vmul.f32 %v2059, 0.5
    %v2062 = vadd.f32 %v2060, 0.5
    %v2063 = vadd.f32 %v2061, 0.5
    %v2064 = vmul.f32 %v2052, %v1748
    %v2065 = vmul.f32 %v2053, %v1749
    %v2066 = vmul.f32 %v2044, %v2054
    %v2067 = vmul.f32 %v2045, %v2055
    %v2068 = vadd.f32 %v2064, %v2066
    %v2069 = vadd.f32 %v2065, %v2067
    %v2070 = vtanh.pop %v2068
    %v2071 = vtanh.pop %v2069
    %v2072 = vmul.f32 %v2062, %v2070
    %v2073 = vmul.f32 %v2063, %v2071
    %v2074 = vpack.c.bf16 %v2073, %v2072
    %2075 = vst [vmem:[#allocation2] sm:$0xff] %v2074
    %v2076 = vld [vmem:[#allocation2] sm:$0xff]
    %v2077 = vld [vmem:[#allocation2 + $0x8] sm:$0xff]
    %2078 = vmatprep.subr.bf16.mxu0 %v777
    %2079 = vmatpush1.bf16.msra.mxu0 %v776
    %2080 = vmatprep.subr.bf16.mxu0 %v781
    %2081 = vmatpush1.bf16.msra.mxu0 %v780
    %2082 = vmatprep.subr.bf16.mxu0 %v785
    %2083 = vmatpush1.bf16.msra.mxu0 %v784
    %2084 = vmatprep.subr.bf16.mxu0 %v789
    %2085 = vmatpush1.bf16.msra.mxu0 %v788
    %2086 = vmatprep.subr.bf16.mxu0 %v793
    %2087 = vmatpush1.bf16.msra.mxu0 %v792
    %2088 = vmatprep.subr.bf16.mxu0 %v797
    %2089 = vmatpush1.bf16.msra.mxu0 %v796
    %2090 = vmatprep.subr.bf16.mxu0 %v801
    %2091 = vmatpush1.bf16.msra.mxu0 %v800
    %2092 = vmatprep.subr.bf16.mxu0 %v805
    %2093 = vmatpush1.bf16.msra.mxu0 %v804
    %2094 = vmatprep.subr.bf16.mxu0 %v809
    %2095 = vmatpush1.bf16.msra.mxu0 %v808
    %2096 = vmatprep.subr.bf16.mxu0 %v813
    %2097 = vmatpush1.bf16.msra.mxu0 %v812
    %2098 = vmatprep.subr.bf16.mxu0 %v817
    %2099 = vmatpush1.bf16.msra.mxu0 %v816
    %2100 = vmatprep.subr.bf16.mxu0 %v821
    %2101 = vmatpush1.bf16.msra.mxu0 %v820
    %2102 = vmatprep.subr.bf16.mxu0 %v825
    %2103 = vmatpush1.bf16.msra.mxu0 %v824
    %2104 = vmatprep.subr.bf16.mxu0 %v829
    %2105 = vmatpush1.bf16.msra.mxu0 %v828
    %2106 = vmatprep.subr.bf16.mxu0 %v833
    %2107 = vmatpush1.bf16.msra.mxu0 %v832
    %2108 = vmatprep.subr.bf16.mxu0 %v837
    %2109 = vmatpush1.bf16.msra.mxu0 %v836
    %2110 = vmatprep.mubr.bf16.mxu0 %v2077
    %2111 = vmatmul.mubr.bf16.gmra.mrb[0].mxu0 %v2076
    %v2112 = vpop.f32.mrb[0].mxu0
    %v2113 = vadd.f32 %v525, %v2112
    %v2114 = vpop.f32.mrb[0].mxu0
    %v2115 = vadd.f32 %v529, %v2114
    %v2116 = vpop.f32.mrb[0].mxu0
    %v2117 = vadd.f32 %v525, %v2116
    %v2118 = vpop.f32.mrb[0].mxu0
    %v2119 = vadd.f32 %v529, %v2118
    %2120 = vdwg.mxu0
    %2121 = vmatprep.subr.bf16.mxu0 %v779
    %2122 = vmatpush1.bf16.msra.mxu0 %v778
    %2123 = vmatprep.subr.bf16.mxu0 %v783
    %2124 = vmatpush1.bf16.msra.mxu0 %v782
    %2125 = vmatprep.subr.bf16.mxu0 %v787
    %2126 = vmatpush1.bf16.msra.mxu0 %v786
    %2127 = vmatprep.subr.bf16.mxu0 %v791
    %2128 = vmatpush1.bf16.msra.mxu0 %v790
    %2129 = vmatprep.subr.bf16.mxu0 %v795
    %2130 = vmatpush1.bf16.msra.mxu0 %v794
    %2131 = vmatprep.subr.bf16.mxu0 %v799
    %2132 = vmatpush1.bf16.msra.mxu0 %v798
    %2133 = vmatprep.subr.bf16.mxu0 %v803
    %2134 = vmatpush1.bf16.msra.mxu0 %v802
    %2135 = vmatprep.subr.bf16.mxu0 %v807
    %2136 = vmatpush1.bf16.msra.mxu0 %v806
    %2137 = vmatprep.subr.bf16.mxu0 %v811
    %2138 = vmatpush1.bf16.msra.mxu0 %v810
    %2139 = vmatprep.subr.bf16.mxu0 %v815
    %2140 = vmatpush1.bf16.msra.mxu0 %v814
    %2141 = vmatprep.subr.bf16.mxu0 %v819
    %2142 = vmatpush1.bf16.msra.mxu0 %v818
    %2143 = vmatprep.subr.bf16.mxu0 %v823
    %2144 = vmatpush1.bf16.msra.mxu0 %v822
    %2145 = vmatprep.subr.bf16.mxu0 %v827
    %2146 = vmatpush1.bf16.msra.mxu0 %v826
    %2147 = vmatprep.subr.bf16.mxu0 %v831
    %2148 = vmatpush1.bf16.msra.mxu0 %v830
    %2149 = vmatprep.subr.bf16.mxu0 %v835
    %2150 = vmatpush1.bf16.msra.mxu0 %v834
    %2151 = vmatprep.subr.bf16.mxu0 %v839
    %2152 = vmatpush1.bf16.msra.mxu0 %v838
    %2153 = vmatprep.mubr.bf16.mxu0 %v2077
    %2154 = vmatmul.mubr.bf16.gmra.mrb[0].mxu0 %v2076
    %v2155 = vpop.f32.mrb[0].mxu0
    %v2156 = vadd.f32 %v533, %v2155
    %v2157 = vpop.f32.mrb[0].mxu0
    %v2158 = vadd.f32 %v537, %v2157
    %v2159 = vpop.f32.mrb[0].mxu0
    %v2160 = vadd.f32 %v533, %v2159
    %v2161 = vpop.f32.mrb[0].mxu0
    %v2162 = vadd.f32 %v537, %v2161
    %2163 = vdwg.mxu0
    %v2164 = vmul.f32 %v2113, 0.5
    %v2165 = vmul.f32 %v2117, 0.5
    %v2166 = vtanh.pop %v2164
    %v2167 = vtanh.pop %v2165
    %v2168 = vmul.f32 %v2166, 0.5
    %v2169 = vmul.f32 %v2167, 0.5
    %v2170 = vadd.f32 %v2168, 0.5
    %v2171 = vadd.f32 %v2169, 0.5
    %v2172 = vmul.f32 %v2115, 0.5
    %v2173 = vmul.f32 %v2119, 0.5
    %v2174 = vtanh.pop %v2172
    %v2175 = vtanh.pop %v2173
    %v2176 = vmul.f32 %v2174, 0.5
    %v2177 = vmul.f32 %v2175, 0.5
    %v2178 = vadd.f32 %v2176, 0.5
    %v2179 = vadd.f32 %v2177, 0.5
    %v2180 = vtanh.pop %v2156
    %v2181 = vtanh.pop %v2160
    %v2182 = vmul.f32 %v2158, 0.5
    %v2183 = vmul.f32 %v2162, 0.5
    %v2184 = vtanh.pop %v2182
    %v2185 = vtanh.pop %v2183
    %v2186 = vmul.f32 %v2184, 0.5
    %v2187 = vmul.f32 %v2185, 0.5
    %v2188 = vadd.f32 %v2186, 0.5
    %v2189 = vadd.f32 %v2187, 0.5
    %v2190 = vmul.f32 %v2178, %v1874
    %v2191 = vmul.f32 %v2179, %v1875
    %v2192 = vmul.f32 %v2170, %v2180
    %v2193 = vmul.f32 %v2171, %v2181
    %v2194 = vadd.f32 %v2190, %v2192
    %v2195 = vadd.f32 %v2191, %v2193
    %v2196 = vtanh.pop %v2194
    %v2197 = vtanh.pop %v2195
    %v2198 = vmul.f32 %v2188, %v2196
    %v2199 = vmul.f32 %v2189, %v2197
    %v2200 = vpack.c.bf16 %v2199, %v2198
    %2201 = vst [vmem:[#allocation2 + $0x8] sm:$0xff] %v2200
    %2202 = vmatprep.subr.bf16.mxu0 0
    %2203 = vmatpush1.bf16.msra.mxu0 %v1066
    %2204 = vmatprep.subr.bf16.mxu0 0
    %2205 = vmatpush1.bf16.msra.mxu0 %v1067
    %2206 = vmatprep.subr.bf16.mxu0 0
    %2207 = vmatpush1.bf16.msra.mxu0 %v1068
    %2208 = vmatprep.subr.bf16.mxu0 0
    %2209 = vmatpush1.bf16.msra.mxu0 %v1069
    %2210 = vmatprep.subr.bf16.mxu0 0
    %2211 = vmatpush1.bf16.msra.mxu0 %v1070
    %2212 = vmatprep.subr.bf16.mxu0 0
    %2213 = vmatpush1.bf16.msra.mxu0 %v1071
    %2214 = vmatprep.subr.bf16.mxu0 0
    %2215 = vmatpush1.bf16.msra.mxu0 %v1072
    %2216 = vmatprep.subr.bf16.mxu0 0
    %2217 = vmatpush1.bf16.msra.mxu0 %v1073
    %2218 = vmatprep.subr.bf16.mxu0 0
    %2219 = vmatpush1.bf16.msra.mxu0 0
    %2220 = vmatprep.subr.bf16.mxu0 0
    %2221 = vmatpush1.bf16.msra.mxu0 0
    %2222 = vmatprep.subr.bf16.mxu0 0
    %2223 = vmatpush1.bf16.msra.mxu0 0
    %2224 = vmatprep.subr.bf16.mxu0 0
    %2225 = vmatpush1.bf16.msra.mxu0 0
    %2226 = vmatprep.subr.bf16.mxu0 0
    %2227 = vmatpush1.bf16.msra.mxu0 0
    %2228 = vmatprep.subr.bf16.mxu0 0
    %2229 = vmatpush1.bf16.msra.mxu0 0
    %2230 = vmatprep.subr.bf16.mxu0 0
    %2231 = vmatpush1.bf16.msra.mxu0 0
    %2232 = vmatprep.subr.bf16.mxu0 0
    %2233 = vmatpush1.bf16.msra.mxu0 0
    %2234 = vmatprep.mubr.bf16.mxu0 0
    %2235 = vmatmul.mubr.bf16.gmra.mrb[0].mxu0 %v2200
    %v2236 = vpop.f32.mrb[0].mxu0
    %v2237 = vadd.f32 %v1032, %v2236
    %v2238 = vpop.f32.mrb[0].mxu0
    %v2239 = vpop.f32.mrb[0].mxu0
    %v2240 = vadd.f32 %v1032, %v2239
    %v2241 = vpop.f32.mrb[0].mxu0
    %2242 = vdwg.mxu0
    %2243 = vmax.xlane.f32.xlu0 %v2237
    %v2244 = vpop.xlane.xlu0 %2243
    %2245 = vmax.xlane.f32.xlu0 %v2240
    %v2246 = vpop.xlane.xlu0 %2245
    %v2247 = vsub.f32 %v2237, %v2244
    %v2248 = vsub.f32 %v2240, %v2246
    %v2249 = vmul.f32 %v2247, 1.442695
    %v2250 = vpow.pop %v2249
    %v2251 = vmul.f32 %v2248, 1.442695
    %v2252 = vpow.pop %v2251
    %2253 = vadd.xlane.f32.xlu0 %v2250
    %v2254 = vpop.xlane.xlu0 %2253
    %2255 = vadd.xlane.f32.xlu0 %v2252
    %v2256 = vpop.xlane.xlu0 %2255
    %v2257 = vrcp.pop %v2254
    %v2258 = vrcp.pop %v2256
    %v2259 = vmul.f32 %v2250, %v2257
    %v2260 = vmul.f32 %v2252, %v2258
    %2261 = vst [vmem:[#allocation12 + $0x18] sm:$0xff] %v2259
    %2262 = vst [vmem:[#allocation12 + $0x38] sm:$0xff] %v2260
    // Predicated region
    $region54: #{tpu_custom_call.1} parent=1 // pred_check
      _
    $region55: #{tpu_custom_call.1} parent=1 // pred_check_branch
      %2264 = sbr.rel (0) target = $region57
    $region56: #{tpu_custom_call.1} parent=1 // pred_region
      %s2266 = ssub.s32 1024, 1024
      %2267 = vsyncadd [#allocation5], %s2266
      %s2268 = sshll.u32 [#allocation12], 4
      %s2269 = int_to_ptr.vmem [resolvable:$true] %s2268
      %2274 = dma.vmem_to_hbm [thread:$0]  %s2269, 1024, %s8, [#allocation5], 512, 512, 32
    $region57: #{tpu_custom_call.1} parent=1 // pred_fallthru
      _
    // Predicated region
    $region58: #{tpu_custom_call.1} parent=1 // pred_check
      _
    $region59: #{tpu_custom_call.1} parent=1 // pred_check_branch
      %2276 = sbr.rel (0) target = $region61
    $region60: #{tpu_custom_call.1} parent=1 // pred_region
      %2277 = dma.done [#allocation5], 1024
    $region61: #{tpu_custom_call.1} parent=1 // pred_fallthru
      _
    %2278 = vsyncpa [#allocation4], 1
    %2279 = vsyncpa [#allocation7], 1
    %2280 = vsyncpa [#allocation10], 1
    %2281 = vsyncpa [#allocation5], 1

</llo_original>
